<compile_context>
chip_gen: v7x
topology: tpu7x:2x2x1
jax: 0.10.0
libtpu: 0.0.40
codegen_flags: <defaults>
</compile_context>

<pallas_src>
from functools import partial

import jax
import jax.numpy as jnp
from jax import lax
from jax.experimental import pallas as pl
from jax.experimental.pallas import tpu as pltpu


def _pick_tile(n, candidates):
    """Largest candidate that evenly divides n, else the full extent."""
    for t in candidates:
        if t <= n and n % t == 0:
            return t
    return n


def _attention_kernel(xq_ref, xkv_ref, wq_ref, wk_ref, wv_ref, wout_ref, bout_ref,
                      o_ref, q_scr, acc_scr, m_scr, l_scr, *kv_cache,
                      heads, dim_head, compute_dtype):
    """Flash-style attention for one (batch, q-tile) over a kv-tile reduction axis.

    xq_ref:   (tq, c)        channels-last query-row slab (bf16)
    xkv_ref:  (tkv, c)       channels-last key/value-row slab (bf16)
    wq_ref:   (c, hidden)    fused Q projection (softmax scale pre-folded)
    wk_ref:   (c, hidden)    fused K projection
    wv_ref:   (c, hidden)    fused V projection
    wout_ref: (c, hidden)    output 1x1-conv weight (original layout)
    bout_ref: (c, 1)         output 1x1-conv bias (f32)
    o_ref:    (c, tq)        lane-dense output block (sequence on the lane axis)
    q_scr:    (tq, hidden)   projected queries for this q-tile (compute dtype)
    acc_scr:  (tq, hidden)   f32 online-softmax numerator accumulator
    m_scr:    (heads, tq, 1) f32 running max
    l_scr:    (heads, tq, 1) f32 running denominator
    kv_cache: optional (n_kv_tiles, tkv, hidden) K and V caches (compute dtype)
    """
    iq = pl.program_id(1)
    ikv = pl.program_id(2)
    nkv = pl.num_programs(2)
    cache_kv = len(kv_cache) == 2

    @pl.when(ikv == 0)
    def _init():
        # Project Q once per kv sweep (scale already folded into Wq in the wrapper).
        q = jnp.dot(xq_ref[...], wq_ref[...], preferred_element_type=jnp.float32)
        q_scr[...] = q.astype(compute_dtype)
        m_scr[...] = jnp.full_like(m_scr, -jnp.inf)
        l_scr[...] = jnp.zeros_like(l_scr)
        acc_scr[...] = jnp.zeros_like(acc_scr)

    if cache_kv:
        k_cache, v_cache = kv_cache

        @pl.when(iq == 0)
        def _project_kv():
            # Project K / V for this kv tile once per batch element and cache it in
            # VMEM for the remaining q-tiles (saves (n_q_tiles-1)x projection flops).
            xkv = xkv_ref[...]
            k_cache[ikv] = jnp.dot(xkv, wk_ref[...],
                                   preferred_element_type=jnp.float32).astype(compute_dtype)
            v_cache[ikv] = jnp.dot(xkv, wv_ref[...],
                                   preferred_element_type=jnp.float32).astype(compute_dtype)

        k = k_cache[ikv]
        v = v_cache[ikv]
    else:
        # Single q-tile (or cache too large): project K / V directly for this kv tile.
        xkv = xkv_ref[...]
        k = jnp.dot(xkv, wk_ref[...], preferred_element_type=jnp.float32).astype(compute_dtype)
        v = jnp.dot(xkv, wv_ref[...], preferred_element_type=jnp.float32).astype(compute_dtype)

    # Small static head count -> Python unroll.
    # TODO(synk): move heads to a grid axis / lax.fori_loop(unroll=True) if `heads`
    # grows enough to pressure the 64-vreg budget.
    for h in range(heads):
        lo, hi = h * dim_head, (h + 1) * dim_head
        qh = q_scr[:, lo:hi]                                   # (tq, dh)  bf16
        kh = k[:, lo:hi]                                       # (tkv, dh) bf16
        vh = v[:, lo:hi]                                       # (tkv, dh) bf16

        # sim = qh @ kh^T: contract last dims, no explicit transpose through the XLU.
        sim = lax.dot_general(qh, kh, (((1,), (1,)), ((), ())),
                              preferred_element_type=jnp.float32)   # (tq, tkv) f32

        m_prev = m_scr[h]                                      # (tq, 1)
        m_new = jnp.maximum(m_prev, jnp.max(sim, axis=-1, keepdims=True))
        alpha = jnp.exp(m_prev - m_new)                        # (tq, 1)
        p = jnp.exp(sim - m_new)                               # (tq, tkv) f32 (unnormalized)

        l_scr[h] = alpha * l_scr[h] + jnp.sum(p, axis=-1, keepdims=True)
        pv = jnp.dot(p.astype(compute_dtype), vh, preferred_element_type=jnp.float32)
        acc_scr[:, lo:hi] = alpha * acc_scr[:, lo:hi] + pv     # static-offset store, no concat
        m_scr[h] = m_new

    @pl.when(ikv == nkv - 1)
    def _finalize():
        # Normalize each head once after the PV matmuls (approx reciprocal -> EUP slot).
        for h in range(heads):
            lo, hi = h * dim_head, (h + 1) * dim_head
            inv_l = pl.reciprocal(l_scr[h], approx=True)       # (tq, 1)
            acc_scr[:, lo:hi] = acc_scr[:, lo:hi] * inv_l

        hcat = acc_scr[...].astype(compute_dtype)              # (tq, hidden)
        # y^T = Wout @ hcat^T produced directly as (c, tq): lane-dense store, no transpose.
        y_t = lax.dot_general(wout_ref[...], hcat, (((1,), (1,)), ((), ())),
                              preferred_element_type=jnp.float32)   # (c, tq)
        y_t = y_t + bout_ref[...]
        o_ref[...] = (y_t * jax.nn.sigmoid(y_t)).astype(o_ref.dtype)   # SiLU


def attention_forward(x_ncl, w_qkv, w_out, b_out, *, heads, dim_head,
                      compute_dtype=jnp.bfloat16):
    """x_ncl: (b, dim, n) as in the PyTorch module.  Returns (b, dim, n) float32."""
    b, c, n = x_ncl.shape
    hidden = heads * dim_head
    scale = dim_head ** (-0.5)

    # q-tile must be a multiple of 128 (lane-dense output block) or the full sequence;
    # kv-tile a multiple of 8 or the full sequence.  Targets sized for v7x's 64 MiB
    # VMEM; they also work on v5e/v6e (128 MiB).
    tq = _pick_tile(n, (256, 128))
    tkv = _pick_tile(n, (512, 256, 128, 64, 32, 16, 8))
    n_q_tiles = n // tq
    n_kv_tiles = n // tkv

    # channels-last bf16 slab for MXU-native matmuls (accumulation stays f32).
    x = jnp.transpose(x_ncl, (0, 2, 1)).astype(compute_dtype)          # (b, n, c)

    # Pre-transposed (c, hidden) projection weights; softmax scale folded into Wq.
    wq_t = (w_qkv[0 * hidden:1 * hidden] * scale).T.astype(compute_dtype)
    wk_t = w_qkv[1 * hidden:2 * hidden].T.astype(compute_dtype)
    wv_t = w_qkv[2 * hidden:3 * hidden].T.astype(compute_dtype)
    wout = w_out.astype(compute_dtype)                                  # (c, hidden)
    bout = b_out.reshape(c, 1).astype(jnp.float32)

    isz = jnp.dtype(compute_dtype).itemsize

    # K/V projection cache across q-tiles: only pays off with >1 q-tile, and only if
    # it comfortably fits VMEM alongside the pipeline buffers (v7x: 64 MiB per TC).
    cache_bytes = 2 * n * hidden * isz
    cache_kv = (n_q_tiles > 1) and (cache_bytes <= (16 << 20))

    scratch_shapes = [
        pltpu.VMEM((tq, hidden), compute_dtype),     # projected Q tile
        pltpu.VMEM((tq, hidden), jnp.float32),       # online-softmax numerator
        pltpu.VMEM((heads, tq, 1), jnp.float32),     # running max
        pltpu.VMEM((heads, tq, 1), jnp.float32),     # running denominator
    ]
    if cache_kv:
        scratch_shapes += [
            pltpu.VMEM((n_kv_tiles, tkv, hidden), compute_dtype),   # K cache
            pltpu.VMEM((n_kv_tiles, tkv, hidden), compute_dtype),   # V cache
        ]

    # Working-set estimate -> scoped VMEM limit (defaults are only 16/32 MiB).
    est = (
        2 * (tq + tkv) * c * isz                 # double-buffered x tiles
        + 2 * 4 * c * hidden * isz               # Wq, Wk, Wv, Wout
        + 2 * 8 * 128 * 4                        # bias (layout-padded)
        + 2 * c * tq * 4                         # output block (f32)
        + tq * hidden * (isz + 4)                # q scratch + f32 accumulator
        + 2 * heads * tq * 128 * 4               # m / l scratch (lane-padded)
        + 2 * tkv * hidden * 4                   # k, v temporaries
        + 3 * tq * tkv * 4                       # sim / p live set
        + 2 * tq * hidden * 4                    # misc temporaries
        + (cache_bytes if cache_kv else 0)       # resident K/V cache
    )
    vmem_limit = int(min(64 << 20, max(32 << 20, 2 * est)))

    # Advisory cost hint for the XLA scheduler around the custom call.
    proj_passes = 2 if cache_kv else 2 * n_q_tiles
    flops = (2 * b * n * c * hidden                       # Q projection
             + proj_passes * 2 * b * n * c * hidden       # K, V projection
             + 4 * b * n * n * hidden                     # Q@K^T + P@V
             + 2 * b * n * hidden * c)                    # output projection
    cost = pl.CostEstimate(
        flops=flops,
        transcendentals=b * heads * n * n,
        bytes_accessed=int(x.size * isz + 4 * c * hidden * isz + b * c * n * 4))

    # With the K/V cache the q-tile axis must run sequentially per core ("arbitrary");
    # batch stays "parallel" for megacore.  Without the cache both outer axes are parallel.
    dims = (("parallel", "arbitrary", "arbitrary") if cache_kv
            else ("parallel", "parallel", "arbitrary"))

    kernel = partial(_attention_kernel, heads=heads, dim_head=dim_head,
                     compute_dtype=compute_dtype)

    return pl.pallas_call(
        kernel,
        out_shape=jax.ShapeDtypeStruct((b, c, n), jnp.float32),
        grid=(b, n_q_tiles, n_kv_tiles),
        in_specs=[
            pl.BlockSpec((None, tq, c), lambda ib, iq, ikv: (ib, iq, 0)),    # x (query rows)
            pl.BlockSpec((None, tkv, c), lambda ib, iq, ikv: (ib, ikv, 0)),  # x (kv rows)
            pl.BlockSpec((c, hidden), lambda ib, iq, ikv: (0, 0)),           # Wq (pre-scaled)
            pl.BlockSpec((c, hidden), lambda ib, iq, ikv: (0, 0)),           # Wk
            pl.BlockSpec((c, hidden), lambda ib, iq, ikv: (0, 0)),           # Wv
            pl.BlockSpec((c, hidden), lambda ib, iq, ikv: (0, 0)),           # Wout
            pl.BlockSpec((c, 1), lambda ib, iq, ikv: (0, 0)),                # bias
        ],
        out_specs=pl.BlockSpec((None, c, tq), lambda ib, iq, ikv: (ib, 0, iq)),
        scratch_shapes=scratch_shapes,
        compiler_params=pltpu.CompilerParams(
            dimension_semantics=dims,
            vmem_limit_bytes=vmem_limit,
        ),
        cost_estimate=cost,
    )(x, x, wq_t, wk_t, wv_t, wout, bout)


def attention_reference(x, w_qkv, w_out, b_out, *, heads, dim_head):
    """Pure-JAX reference mirroring the PyTorch forward exactly (f32)."""
    b, c, n = x.shape
    hidden = heads * dim_head
    scale = dim_head ** (-0.5)
    qkv = jnp.einsum('oc,bcn->bon', w_qkv, x)
    q, k, v = jnp.split(qkv, 3, axis=1)
    resh = lambda t: t.reshape(b, heads, dim_head, n)
    q, k, v = resh(q) * scale, resh(k), resh(v)
    sim = jnp.einsum('bhdi,bhdj->bhij', q, k)
    attn = jax.nn.softmax(sim, axis=-1)
    out = jnp.einsum('bhij,bhdj->bhid', attn, v)
    out = jnp.transpose(out, (0, 1, 3, 2)).reshape(b, hidden, n)
    y = jnp.einsum('oc,bcn->bon', w_out, out) + b_out[None, :, None]
    return jax.nn.silu(y)


def _check(batch, dim, seq, heads, dim_head, seed, tol):
    hidden = heads * dim_head
    key = jax.random.PRNGKey(seed)
    kx, kqkv, kwo, kbo = jax.random.split(key, 4)
    x = jax.random.normal(kx, (batch, dim, seq), dtype=jnp.float32)
    w_qkv = 0.1 * jax.random.normal(kqkv, (hidden * 3, dim), dtype=jnp.float32)  # to_qkv (no bias)
    w_out = 0.1 * jax.random.normal(kwo, (dim, hidden), dtype=jnp.float32)       # to_out weight
    b_out = 0.1 * jax.random.normal(kbo, (dim,), dtype=jnp.float32)              # to_out bias

    y = attention_forward(x, w_qkv, w_out, b_out, heads=heads, dim_head=dim_head)
    y = jax.block_until_ready(y)
    y_ref = attention_reference(x, w_qkv, w_out, b_out, heads=heads, dim_head=dim_head)
    assert y.shape == (batch, dim, seq)
    err = float(jnp.max(jnp.abs(y - y_ref)))
    assert jnp.allclose(y, y_ref, atol=tol, rtol=tol), f"mismatch vs reference (max abs err {err})"


if __name__ == "__main__":
    # Small shape consistent with the module (single-tile path, no K/V cache).
    _check(batch=2, dim=8, seq=16, heads=2, dim_head=16, seed=0, tol=2e-2)
    # Module defaults (heads=4, dim_head=32) at a length that exercises the
    # multi-q-tile / multi-kv-tile flash path with the VMEM K/V cache
    # (grid = (2, 4, 2)).
    _check(batch=2, dim=64, seq=1024, heads=4, dim_head=32, seed=0, tol=3e-2)
    print("KERNEL_OK")
</pallas_src>

<mosaic_0001>
module attributes {stable_mosaic.version = 11 : i64} {
  func.func @_attention_kernel(%arg0: i32, %arg1: i32, %arg2: i32, %arg3: memref<1x16x8xbf16, #tpu.memory_space<vmem>>, %arg4: memref<1x16x8xbf16, #tpu.memory_space<vmem>>, %arg5: memref<8x32xbf16, #tpu.memory_space<vmem>>, %arg6: memref<8x32xbf16, #tpu.memory_space<vmem>>, %arg7: memref<8x32xbf16, #tpu.memory_space<vmem>>, %arg8: memref<8x32xbf16, #tpu.memory_space<vmem>>, %arg9: memref<8x1xf32, #tpu.memory_space<vmem>>, %arg10: memref<1x8x16xf32, #tpu.memory_space<vmem>>, %arg11: memref<16x32xbf16, #tpu.memory_space<vmem>>, %arg12: memref<16x32xf32, #tpu.memory_space<vmem>>, %arg13: memref<2x16x1xf32, #tpu.memory_space<vmem>>, %arg14: memref<2x16x1xf32, #tpu.memory_space<vmem>>) attributes {dimension_semantics = [#tpu.dimension_semantics<parallel>, #tpu.dimension_semantics<parallel>, #tpu.dimension_semantics<arbitrary>], iteration_bounds = array<i64: 2, 1, 1>, scalar_prefetch = 0 : i64, scratch_operands = 4 : i64, tpu.core_type = #tpu.core_type<tc>, window_params = [{transform_indices = @transform_0, window_bounds = array<i64: 1, 16, 8>}, {transform_indices = @transform_1, window_bounds = array<i64: 1, 16, 8>}, {pipeline_mode = #tpu.pipeline_mode<synchronous>, transform_indices = @transform_2, window_bounds = array<i64: 8, 32>}, {pipeline_mode = #tpu.pipeline_mode<synchronous>, transform_indices = @transform_3, window_bounds = array<i64: 8, 32>}, {pipeline_mode = #tpu.pipeline_mode<synchronous>, transform_indices = @transform_4, window_bounds = array<i64: 8, 32>}, {pipeline_mode = #tpu.pipeline_mode<synchronous>, transform_indices = @transform_5, window_bounds = array<i64: 8, 32>}, {pipeline_mode = #tpu.pipeline_mode<synchronous>, transform_indices = @transform_6, window_bounds = array<i64: 8, 1>}, {transform_indices = @transform_7, window_bounds = array<i64: 1, 8, 16>}]} {
    %c0_i32 = arith.constant 0 : i32
    %0 = arith.cmpi eq, %arg2, %c0_i32 : i32
    %1 = arith.extui %0 : i1 to i32
    %c0_i32_0 = arith.constant 0 : i32
    %2 = arith.cmpi ne, %1, %c0_i32_0 : i32
    scf.if %2 {
      %c0_52 = arith.constant 0 : index
      %c0_53 = arith.constant 0 : index
      %c0_54 = arith.constant 0 : index
      %80 = vector.load %arg3[%c0_52, %c0_53, %c0_54] : memref<1x16x8xbf16, #tpu.memory_space<vmem>>, vector<1x16x8xbf16>
      %81 = vector.shape_cast %80 : vector<1x16x8xbf16> to vector<16x8xbf16>
      %c0_55 = arith.constant 0 : index
      %c0_56 = arith.constant 0 : index
      %82 = vector.load %arg5[%c0_55, %c0_56] : memref<8x32xbf16, #tpu.memory_space<vmem>>, vector<8x32xbf16>
      %cst_57 = arith.constant dense<0.000000e+00> : vector<16x32xf32>
      %83 = tpu.matmul %81, %82, %cst_57 {dimension_numbers = #tpu.dot_dimension_numbers<[1], [0], [0], [1], [0, 0, 1, 1], [], []>} : vector<16x8xbf16>, vector<8x32xbf16>, vector<16x32xf32> -> vector<16x32xf32>
      %84 = arith.truncf %83 : vector<16x32xf32> to vector<16x32xbf16>
      %c0_58 = arith.constant 0 : index
      %c0_59 = arith.constant 0 : index
      %85 = vector.load %arg11[%c0_58, %c0_59] : memref<16x32xbf16, #tpu.memory_space<vmem>>, vector<16x32xbf16>
      tpu.vector_store %arg11[%c0_58, %c0_59], %84 {strides = array<i32>} : memref<16x32xbf16, #tpu.memory_space<vmem>>, vector<16x32xbf16>,
      %cst_60 = arith.constant 0xFF800000 : f32
      %86 = vector.broadcast %cst_60 : f32 to vector<2x16x1xf32>
      %c0_61 = arith.constant 0 : index
      %c0_62 = arith.constant 0 : index
      %c0_63 = arith.constant 0 : index
      %87 = vector.load %arg13[%c0_61, %c0_62, %c0_63] : memref<2x16x1xf32, #tpu.memory_space<vmem>>, vector<2x16x1xf32>
      tpu.vector_store %arg13[%c0_61, %c0_62, %c0_63], %86 {strides = array<i32>} : memref<2x16x1xf32, #tpu.memory_space<vmem>>, vector<2x16x1xf32>,
      %cst_64 = arith.constant 0.000000e+00 : f32
      %88 = vector.broadcast %cst_64 : f32 to vector<2x16x1xf32>
      %c0_65 = arith.constant 0 : index
      %c0_66 = arith.constant 0 : index
      %c0_67 = arith.constant 0 : index
      %89 = vector.load %arg14[%c0_65, %c0_66, %c0_67] : memref<2x16x1xf32, #tpu.memory_space<vmem>>, vector<2x16x1xf32>
      tpu.vector_store %arg14[%c0_65, %c0_66, %c0_67], %88 {strides = array<i32>} : memref<2x16x1xf32, #tpu.memory_space<vmem>>, vector<2x16x1xf32>,
      %cst_68 = arith.constant 0.000000e+00 : f32
      %90 = vector.broadcast %cst_68 : f32 to vector<16x32xf32>
      %c0_69 = arith.constant 0 : index
      %c0_70 = arith.constant 0 : index
      %91 = vector.load %arg12[%c0_69, %c0_70] : memref<16x32xf32, #tpu.memory_space<vmem>>, vector<16x32xf32>
      tpu.vector_store %arg12[%c0_69, %c0_70], %90 {strides = array<i32>} : memref<16x32xf32, #tpu.memory_space<vmem>>, vector<16x32xf32>,
    } else {
    }
    %c0 = arith.constant 0 : index
    %c0_1 = arith.constant 0 : index
    %c0_2 = arith.constant 0 : index
    %3 = vector.load %arg4[%c0, %c0_1, %c0_2] : memref<1x16x8xbf16, #tpu.memory_space<vmem>>, vector<1x16x8xbf16>
    %4 = vector.shape_cast %3 : vector<1x16x8xbf16> to vector<16x8xbf16>
    %c0_3 = arith.constant 0 : index
    %c0_4 = arith.constant 0 : index
    %5 = vector.load %arg6[%c0_3, %c0_4] : memref<8x32xbf16, #tpu.memory_space<vmem>>, vector<8x32xbf16>
    %cst = arith.constant dense<0.000000e+00> : vector<16x32xf32>
    %6 = tpu.matmul %4, %5, %cst {dimension_numbers = #tpu.dot_dimension_numbers<[1], [0], [0], [1], [0, 0, 1, 1], [], []>} : vector<16x8xbf16>, vector<8x32xbf16>, vector<16x32xf32> -> vector<16x32xf32>
    %7 = arith.truncf %6 : vector<16x32xf32> to vector<16x32xbf16>
    %c0_5 = arith.constant 0 : index
    %c0_6 = arith.constant 0 : index
    %8 = vector.load %arg7[%c0_5, %c0_6] : memref<8x32xbf16, #tpu.memory_space<vmem>>, vector<8x32xbf16>
    %cst_7 = arith.constant dense<0.000000e+00> : vector<16x32xf32>
    %9 = tpu.matmul %4, %8, %cst_7 {dimension_numbers = #tpu.dot_dimension_numbers<[1], [0], [0], [1], [0, 0, 1, 1], [], []>} : vector<16x8xbf16>, vector<8x32xbf16>, vector<16x32xf32> -> vector<16x32xf32>
    %10 = arith.truncf %9 : vector<16x32xf32> to vector<16x32xbf16>
    %c0_8 = arith.constant 0 : index
    %c0_9 = arith.constant 0 : index
    %11 = vector.load %arg11[%c0_8, %c0_9] : memref<16x32xbf16, #tpu.memory_space<vmem>>, vector<16x16xbf16>
    %12 = vector.extract_strided_slice %7 {offsets = [0, 0], sizes = [16, 16], strides = [1, 1]} : vector<16x32xbf16> to vector<16x16xbf16>
    %13 = vector.extract_strided_slice %10 {offsets = [0, 0], sizes = [16, 16], strides = [1, 1]} : vector<16x32xbf16> to vector<16x16xbf16>
    %cst_10 = arith.constant dense<0.000000e+00> : vector<16x16xf32>
    %14 = tpu.matmul %11, %12, %cst_10 {dimension_numbers = #tpu.dot_dimension_numbers<[1], [1], [0], [0], [0, 0, 1, 0], [], []>} : vector<16x16xbf16>, vector<16x16xbf16>, vector<16x16xf32> -> vector<16x16xf32>
    %c0_11 = arith.constant 0 : index
    %c0_12 = arith.constant 0 : index
    %c0_13 = arith.constant 0 : index
    %15 = vector.load %arg13[%c0_11, %c0_12, %c0_13] : memref<2x16x1xf32, #tpu.memory_space<vmem>>, vector<1x16x1xf32>
    %16 = vector.shape_cast %15 : vector<1x16x1xf32> to vector<16x1xf32>
    %cst_14 = arith.constant dense<0xFF800000> : vector<16xf32>
    %17 = vector.multi_reduction <maximumf>, %14, %cst_14 [1] : vector<16x16xf32> to vector<16xf32>
    %18 = vector.shape_cast %17 : vector<16xf32> to vector<16x1xf32>
    %19 = arith.maximumf %16, %18 : vector<16x1xf32>
    %20 = arith.subf %16, %19 : vector<16x1xf32>
    %21 = math.exp %20 : vector<16x1xf32>
    %22 = vector.broadcast %19 : vector<16x1xf32> to vector<16x16xf32>
    %23 = arith.subf %14, %22 : vector<16x16xf32>
    %24 = math.exp %23 : vector<16x16xf32>
    %c0_15 = arith.constant 0 : index
    %c0_16 = arith.constant 0 : index
    %c0_17 = arith.constant 0 : index
    %25 = vector.load %arg14[%c0_15, %c0_16, %c0_17] : memref<2x16x1xf32, #tpu.memory_space<vmem>>, vector<1x16x1xf32>
    %26 = vector.shape_cast %25 : vector<1x16x1xf32> to vector<16x1xf32>
    %27 = arith.mulf %21, %26 : vector<16x1xf32>
    %cst_18 = arith.constant dense<0.000000e+00> : vector<16xf32>
    %28 = vector.multi_reduction <add>, %24, %cst_18 [1] : vector<16x16xf32> to vector<16xf32>
    %29 = vector.shape_cast %28 : vector<16xf32> to vector<16x1xf32>
    %30 = arith.addf %27, %29 : vector<16x1xf32>
    %c0_19 = arith.constant 0 : index
    %c0_20 = arith.constant 0 : index
    %c0_21 = arith.constant 0 : index
    %31 = vector.load %arg14[%c0_19, %c0_20, %c0_21] : memref<2x16x1xf32, #tpu.memory_space<vmem>>, vector<1x16x1xf32>
    %32 = vector.shape_cast %31 : vector<1x16x1xf32> to vector<16x1xf32>
    %33 = vector.shape_cast %30 : vector<16x1xf32> to vector<1x16x1xf32>
    tpu.vector_store %arg14[%c0_19, %c0_20, %c0_21], %33 {strides = array<i32>} : memref<2x16x1xf32, #tpu.memory_space<vmem>>, vector<1x16x1xf32>,
    %34 = arith.truncf %24 : vector<16x16xf32> to vector<16x16xbf16>
    %cst_22 = arith.constant dense<0.000000e+00> : vector<16x16xf32>
    %35 = tpu.matmul %34, %13, %cst_22 {dimension_numbers = #tpu.dot_dimension_numbers<[1], [0], [0], [1], [0, 0, 1, 1], [], []>} : vector<16x16xbf16>, vector<16x16xbf16>, vector<16x16xf32> -> vector<16x16xf32>
    %c0_23 = arith.constant 0 : index
    %c0_24 = arith.constant 0 : index
    %36 = vector.load %arg12[%c0_23, %c0_24] : memref<16x32xf32, #tpu.memory_space<vmem>>, vector<16x16xf32>
    %37 = vector.broadcast %21 : vector<16x1xf32> to vector<16x16xf32>
    %38 = arith.mulf %37, %36 : vector<16x16xf32>
    %39 = arith.addf %38, %35 : vector<16x16xf32>
    %c0_25 = arith.constant 0 : index
    %c0_26 = arith.constant 0 : index
    %40 = vector.load %arg12[%c0_25, %c0_26] : memref<16x32xf32, #tpu.memory_space<vmem>>, vector<16x16xf32>
    tpu.vector_store %arg12[%c0_25, %c0_26], %39 {strides = array<i32>} : memref<16x32xf32, #tpu.memory_space<vmem>>, vector<16x16xf32>,
    %c0_27 = arith.constant 0 : index
    %c0_28 = arith.constant 0 : index
    %c0_29 = arith.constant 0 : index
    %41 = vector.load %arg13[%c0_27, %c0_28, %c0_29] : memref<2x16x1xf32, #tpu.memory_space<vmem>>, vector<1x16x1xf32>
    %42 = vector.shape_cast %41 : vector<1x16x1xf32> to vector<16x1xf32>
    %43 = vector.shape_cast %19 : vector<16x1xf32> to vector<1x16x1xf32>
    tpu.vector_store %arg13[%c0_27, %c0_28, %c0_29], %43 {strides = array<i32>} : memref<2x16x1xf32, #tpu.memory_space<vmem>>, vector<1x16x1xf32>,
    %c0_30 = arith.constant 0 : index
    %c16 = arith.constant 16 : index
    %44 = vector.load %arg11[%c0_30, %c16] : memref<16x32xbf16, #tpu.memory_space<vmem>>, vector<16x16xbf16>
    %45 = vector.extract_strided_slice %7 {offsets = [0, 16], sizes = [16, 16], strides = [1, 1]} : vector<16x32xbf16> to vector<16x16xbf16>
    %46 = vector.extract_strided_slice %10 {offsets = [0, 16], sizes = [16, 16], strides = [1, 1]} : vector<16x32xbf16> to vector<16x16xbf16>
    %cst_31 = arith.constant dense<0.000000e+00> : vector<16x16xf32>
    %47 = tpu.matmul %44, %45, %cst_31 {dimension_numbers = #tpu.dot_dimension_numbers<[1], [1], [0], [0], [0, 0, 1, 0], [], []>} : vector<16x16xbf16>, vector<16x16xbf16>, vector<16x16xf32> -> vector<16x16xf32>
    %c1 = arith.constant 1 : index
    %c0_32 = arith.constant 0 : index
    %c0_33 = arith.constant 0 : index
    %48 = vector.load %arg13[%c1, %c0_32, %c0_33] : memref<2x16x1xf32, #tpu.memory_space<vmem>>, vector<1x16x1xf32>
    %49 = vector.shape_cast %48 : vector<1x16x1xf32> to vector<16x1xf32>
    %cst_34 = arith.constant dense<0xFF800000> : vector<16xf32>
    %50 = vector.multi_reduction <maximumf>, %47, %cst_34 [1] : vector<16x16xf32> to vector<16xf32>
    %51 = vector.shape_cast %50 : vector<16xf32> to vector<16x1xf32>
    %52 = arith.maximumf %49, %51 : vector<16x1xf32>
    %53 = arith.subf %49, %52 : vector<16x1xf32>
    %54 = math.exp %53 : vector<16x1xf32>
    %55 = vector.broadcast %52 : vector<16x1xf32> to vector<16x16xf32>
    %56 = arith.subf %47, %55 : vector<16x16xf32>
    %57 = math.exp %56 : vector<16x16xf32>
    %c1_35 = arith.constant 1 : index
    %c0_36 = arith.constant 0 : index
    %c0_37 = arith.constant 0 : index
    %58 = vector.load %arg14[%c1_35, %c0_36, %c0_37] : memref<2x16x1xf32, #tpu.memory_space<vmem>>, vector<1x16x1xf32>
    %59 = vector.shape_cast %58 : vector<1x16x1xf32> to vector<16x1xf32>
    %60 = arith.mulf %54, %59 : vector<16x1xf32>
    %cst_38 = arith.constant dense<0.000000e+00> : vector<16xf32>
    %61 = vector.multi_reduction <add>, %57, %cst_38 [1] : vector<16x16xf32> to vector<16xf32>
    %62 = vector.shape_cast %61 : vector<16xf32> to vector<16x1xf32>
    %63 = arith.addf %60, %62 : vector<16x1xf32>
    %c1_39 = arith.constant 1 : index
    %c0_40 = arith.constant 0 : index
    %c0_41 = arith.constant 0 : index
    %64 = vector.load %arg14[%c1_39, %c0_40, %c0_41] : memref<2x16x1xf32, #tpu.memory_space<vmem>>, vector<1x16x1xf32>
    %65 = vector.shape_cast %64 : vector<1x16x1xf32> to vector<16x1xf32>
    %66 = vector.shape_cast %63 : vector<16x1xf32> to vector<1x16x1xf32>
    tpu.vector_store %arg14[%c1_39, %c0_40, %c0_41], %66 {strides = array<i32>} : memref<2x16x1xf32, #tpu.memory_space<vmem>>, vector<1x16x1xf32>,
    %67 = arith.truncf %57 : vector<16x16xf32> to vector<16x16xbf16>
    %cst_42 = arith.constant dense<0.000000e+00> : vector<16x16xf32>
    %68 = tpu.matmul %67, %46, %cst_42 {dimension_numbers = #tpu.dot_dimension_numbers<[1], [0], [0], [1], [0, 0, 1, 1], [], []>} : vector<16x16xbf16>, vector<16x16xbf16>, vector<16x16xf32> -> vector<16x16xf32>
    %c0_43 = arith.constant 0 : index
    %c16_44 = arith.constant 16 : index
    %69 = vector.load %arg12[%c0_43, %c16_44] : memref<16x32xf32, #tpu.memory_space<vmem>>, vector<16x16xf32>
    %70 = vector.broadcast %54 : vector<16x1xf32> to vector<16x16xf32>
    %71 = arith.mulf %70, %69 : vector<16x16xf32>
    %72 = arith.addf %71, %68 : vector<16x16xf32>
    %c0_45 = arith.constant 0 : index
    %c16_46 = arith.constant 16 : index
    %73 = vector.load %arg12[%c0_45, %c16_46] : memref<16x32xf32, #tpu.memory_space<vmem>>, vector<16x16xf32>
    tpu.vector_store %arg12[%c0_45, %c16_46], %72 {strides = array<i32>} : memref<16x32xf32, #tpu.memory_space<vmem>>, vector<16x16xf32>,
    %c1_47 = arith.constant 1 : index
    %c0_48 = arith.constant 0 : index
    %c0_49 = arith.constant 0 : index
    %74 = vector.load %arg13[%c1_47, %c0_48, %c0_49] : memref<2x16x1xf32, #tpu.memory_space<vmem>>, vector<1x16x1xf32>
    %75 = vector.shape_cast %74 : vector<1x16x1xf32> to vector<16x1xf32>
    %76 = vector.shape_cast %52 : vector<16x1xf32> to vector<1x16x1xf32>
    tpu.vector_store %arg13[%c1_47, %c0_48, %c0_49], %76 {strides = array<i32>} : memref<2x16x1xf32, #tpu.memory_space<vmem>>, vector<1x16x1xf32>,
    %c0_i32_50 = arith.constant 0 : i32
    %77 = arith.cmpi eq, %arg2, %c0_i32_50 : i32
    %78 = arith.extui %77 : i1 to i32
    %c0_i32_51 = arith.constant 0 : i32
    %79 = arith.cmpi ne, %78, %c0_i32_51 : i32
    scf.if %79 {
      %c0_52 = arith.constant 0 : index
      %c0_53 = arith.constant 0 : index
      %c0_54 = arith.constant 0 : index
      %80 = vector.load %arg14[%c0_52, %c0_53, %c0_54] : memref<2x16x1xf32, #tpu.memory_space<vmem>>, vector<1x16x1xf32>
      %81 = vector.shape_cast %80 : vector<1x16x1xf32> to vector<16x1xf32>
      %82 = tpu.reciprocal %81 {approx = true} : vector<16x1xf32> -> vector<16x1xf32>
      %c0_55 = arith.constant 0 : index
      %c0_56 = arith.constant 0 : index
      %83 = vector.load %arg12[%c0_55, %c0_56] : memref<16x32xf32, #tpu.memory_space<vmem>>, vector<16x16xf32>
      %84 = vector.broadcast %82 : vector<16x1xf32> to vector<16x16xf32>
      %85 = arith.mulf %83, %84 : vector<16x16xf32>
      %c0_57 = arith.constant 0 : index
      %c0_58 = arith.constant 0 : index
      %86 = vector.load %arg12[%c0_57, %c0_58] : memref<16x32xf32, #tpu.memory_space<vmem>>, vector<16x16xf32>
      tpu.vector_store %arg12[%c0_57, %c0_58], %85 {strides = array<i32>} : memref<16x32xf32, #tpu.memory_space<vmem>>, vector<16x16xf32>,
      %c1_59 = arith.constant 1 : index
      %c0_60 = arith.constant 0 : index
      %c0_61 = arith.constant 0 : index
      %87 = vector.load %arg14[%c1_59, %c0_60, %c0_61] : memref<2x16x1xf32, #tpu.memory_space<vmem>>, vector<1x16x1xf32>
      %88 = vector.shape_cast %87 : vector<1x16x1xf32> to vector<16x1xf32>
      %89 = tpu.reciprocal %88 {approx = true} : vector<16x1xf32> -> vector<16x1xf32>
      %c0_62 = arith.constant 0 : index
      %c16_63 = arith.constant 16 : index
      %90 = vector.load %arg12[%c0_62, %c16_63] : memref<16x32xf32, #tpu.memory_space<vmem>>, vector<16x16xf32>
      %91 = vector.broadcast %89 : vector<16x1xf32> to vector<16x16xf32>
      %92 = arith.mulf %90, %91 : vector<16x16xf32>
      %c0_64 = arith.constant 0 : index
      %c16_65 = arith.constant 16 : index
      %93 = vector.load %arg12[%c0_64, %c16_65] : memref<16x32xf32, #tpu.memory_space<vmem>>, vector<16x16xf32>
      tpu.vector_store %arg12[%c0_64, %c16_65], %92 {strides = array<i32>} : memref<16x32xf32, #tpu.memory_space<vmem>>, vector<16x16xf32>,
      %c0_66 = arith.constant 0 : index
      %c0_67 = arith.constant 0 : index
      %94 = vector.load %arg12[%c0_66, %c0_67] : memref<16x32xf32, #tpu.memory_space<vmem>>, vector<16x32xf32>
      %95 = arith.truncf %94 : vector<16x32xf32> to vector<16x32xbf16>
      %c0_68 = arith.constant 0 : index
      %c0_69 = arith.constant 0 : index
      %96 = vector.load %arg8[%c0_68, %c0_69] : memref<8x32xbf16, #tpu.memory_space<vmem>>, vector<8x32xbf16>
      %cst_70 = arith.constant dense<0.000000e+00> : vector<8x16xf32>
      %97 = tpu.matmul %96, %95, %cst_70 {dimension_numbers = #tpu.dot_dimension_numbers<[1], [1], [0], [0], [0, 0, 1, 0], [], []>} : vector<8x32xbf16>, vector<16x32xbf16>, vector<8x16xf32> -> vector<8x16xf32>
      %c0_71 = arith.constant 0 : index
      %c0_72 = arith.constant 0 : index
      %98 = vector.load %arg9[%c0_71, %c0_72] : memref<8x1xf32, #tpu.memory_space<vmem>>, vector<8x1xf32>
      %99 = vector.broadcast %98 : vector<8x1xf32> to vector<8x16xf32>
      %100 = arith.addf %97, %99 : vector<8x16xf32>
      %101 = arith.negf %100 : vector<8x16xf32>
      %102 = math.exp %101 : vector<8x16xf32>
      %cst_73 = arith.constant 1.000000e+00 : f32
      %103 = vector.broadcast %cst_73 : f32 to vector<8x16xf32>
      %104 = arith.addf %103, %102 : vector<8x16xf32>
      %105 = arith.divf %103, %104 : vector<8x16xf32>
      %106 = arith.mulf %100, %105 : vector<8x16xf32>
      %c0_74 = arith.constant 0 : index
      %c0_75 = arith.constant 0 : index
      %c0_76 = arith.constant 0 : index
      %107 = vector.load %arg10[%c0_74, %c0_75, %c0_76] : memref<1x8x16xf32, #tpu.memory_space<vmem>>, vector<1x8x16xf32>
      %108 = vector.shape_cast %107 : vector<1x8x16xf32> to vector<8x16xf32>
      %109 = vector.shape_cast %106 : vector<8x16xf32> to vector<1x8x16xf32>
      tpu.vector_store %arg10[%c0_74, %c0_75, %c0_76], %109 {strides = array<i32>} : memref<1x8x16xf32, #tpu.memory_space<vmem>>, vector<1x8x16xf32>,
    } else {
    }
    return
  }
  func.func @transform_0(%arg0: i32, %arg1: i32, %arg2: i32) -> (i32, i32, i32) {
    %c0_i32 = arith.constant 0 : i32
    %c0_i32_0 = arith.constant 0 : i32
    return %arg0, %arg1, %c0_i32 : i32, i32, i32
  }
  func.func @transform_1(%arg0: i32, %arg1: i32, %arg2: i32) -> (i32, i32, i32) {
    %c0_i32 = arith.constant 0 : i32
    %c0_i32_0 = arith.constant 0 : i32
    return %arg0, %arg2, %c0_i32 : i32, i32, i32
  }
  func.func @transform_2(%arg0: i32, %arg1: i32, %arg2: i32) -> (i32, i32) {
    %c0_i32 = arith.constant 0 : i32
    %c0_i32_0 = arith.constant 0 : i32
    %c0_i32_1 = arith.constant 0 : i32
    return %c0_i32, %c0_i32_0 : i32, i32
  }
  func.func @transform_3(%arg0: i32, %arg1: i32, %arg2: i32) -> (i32, i32) {
    %c0_i32 = arith.constant 0 : i32
    %c0_i32_0 = arith.constant 0 : i32
    %c0_i32_1 = arith.constant 0 : i32
    return %c0_i32, %c0_i32_0 : i32, i32
  }
  func.func @transform_4(%arg0: i32, %arg1: i32, %arg2: i32) -> (i32, i32) {
    %c0_i32 = arith.constant 0 : i32
    %c0_i32_0 = arith.constant 0 : i32
    %c0_i32_1 = arith.constant 0 : i32
    return %c0_i32, %c0_i32_0 : i32, i32
  }
  func.func @transform_5(%arg0: i32, %arg1: i32, %arg2: i32) -> (i32, i32) {
    %c0_i32 = arith.constant 0 : i32
    %c0_i32_0 = arith.constant 0 : i32
    %c0_i32_1 = arith.constant 0 : i32
    return %c0_i32, %c0_i32_0 : i32, i32
  }
  func.func @transform_6(%arg0: i32, %arg1: i32, %arg2: i32) -> (i32, i32) {
    %c0_i32 = arith.constant 0 : i32
    %c0_i32_0 = arith.constant 0 : i32
    %c0_i32_1 = arith.constant 0 : i32
    return %c0_i32, %c0_i32_0 : i32, i32
  }
  func.func @transform_7(%arg0: i32, %arg1: i32, %arg2: i32) -> (i32, i32, i32) {
    %c0_i32 = arith.constant 0 : i32
    %c0_i32_0 = arith.constant 0 : i32
    return %arg0, %c0_i32, %arg1 : i32, i32, i32
  }
}

</mosaic_0001>

<llo_original>
// kernel: tpu_custom_call.1
$region0: #{tpu_custom_call.1}
  #allocation0 [shape = 'u32[]', space=smem, size = 0x4, offset = 0x4, fixed_abs, tag = 'smem constant byte address 0x4 - core index']
  #allocation1 [shape = 'u32[144,128]{1,0:T(1,128)}', space=vmem, size = 0x12000, scoped, tag = 'internal scratch']
  #allocation2 [shape = 'bf16[16,32]{1,0:T(16,128)(2,1)}', space=vmem, size = 0x1000, scoped, tag = 'scratch operand']
  #allocation3 [shape = 'f32[16,32]{1,0:T(8,128)}', space=vmem, size = 0x2000, scoped, tag = 'scratch operand']
  #allocation4 [shape = 'f32[2,16,1]{2,1,0:T(8,128)}', space=vmem, size = 0x4000, scoped, tag = 'scratch operand']
  #allocation5 [shape = 'f32[2,16,1]{2,1,0:T(8,128)}', space=vmem, size = 0x4000, scoped, tag = 'scratch operand']
  %s0 = inlined_call_operand.vmem [shape: bf16[2,16,8], index: 0, kind: input, shape index: {}]
  %s1 = inlined_call_operand.vmem [shape: bf16[2,16,8], index: 1, kind: input, shape index: {}]
  %s2 = inlined_call_operand.vmem [shape: bf16[8,32], index: 2, kind: input, shape index: {}]
  %s3 = inlined_call_operand.vmem [shape: bf16[8,32], index: 3, kind: input, shape index: {}]
  %s4 = inlined_call_operand.vmem [shape: bf16[8,32], index: 4, kind: input, shape index: {}]
  %s5 = inlined_call_operand.vmem [shape: bf16[8,32], index: 5, kind: input, shape index: {}]
  %s6 = inlined_call_operand.vmem [shape: f32[8,1], index: 6, kind: input, shape index: {}]
  %s7 = inlined_call_operand.hbm [shape: f32[2,8,16], index: 7, kind: output, shape index: {}]
  %s8 = sld [smem:[#allocation0]]
  $region69: #{tpu_custom_call.1} parent=0
    _
  %s10 = ssub.s32 1, %s8
  %s11 = scalar_select 0, %s10, %s8
  $region1: #{tpu_custom_call.1} parent=0
    #allocation6 [shape = 'u8[8192]{0}', space=vmem, size = 0x2000, scoped, tag = 'output window, operand 0']
    #allocation7 [shape = 's32[2]{0}', space=sflag, size = 0x8, scoped, tag = 'scoped memory for tpu_custom_call.1']
    %12 = vsyncpa [#allocation7], 0
    %s13 = scalar_lea.sflag [#allocation7], 1
    %14 = vsyncpa %s13, 0
    loop: start=0, step=1, limit=4
    $region2: #{tpu_custom_call.1} parent=1 // loop_pre_header
      _
    $region3: #{tpu_custom_call.1} parent=1 // loop_header
      %s16 = sphi 0, %s20
      %p17 = scmp.ge.s32.totalorder %s16, 4
      %s23 = sphi 0, %s42
      %s24 = sphi 0, %s38
      %s25 = sphi 0, %s34
      %s26 = sphi 0, %s23
      %s27 = sphi 0, %s24
      %s28 = sphi 0, %s25
      %s29 = sphi 0, %s26
      %s30 = sphi 0, %s27
      %s31 = sphi 0, %s28
      %s47 = sphi 0, %s49
      %s50 = sphi 0, %s47
      %s51 = sphi 0, %s50
      %s67 = sphi 0, %s51
      %s75 = sphi 0, %s77
      %s78 = sphi 0, %s75
      %s79 = sphi 0, %s78
      %s95 = sphi 0, %s79
      %s99 = sphi 0, %s99
      %s101 = sphi 0, %s99
      %s102 = sphi 0, %s101
      %s116 = sphi 0, %s102
      %s120 = sphi 0, %s120
      %s122 = sphi 0, %s120
      %s123 = sphi 0, %s122
      %s137 = sphi 0, %s123
      %s141 = sphi 0, %s141
      %s143 = sphi 0, %s141
      %s144 = sphi 0, %s143
      %s158 = sphi 0, %s144
      %s162 = sphi 0, %s162
      %s164 = sphi 0, %s162
      %s165 = sphi 0, %s164
      %s179 = sphi 0, %s165
      %s183 = sphi 0, %s183
      %s185 = sphi 0, %s183
      %s186 = sphi 0, %s185
      %s200 = sphi 0, %s186
      %s208 = sphi 0, %s210
      %s211 = sphi 0, %s208
      %s212 = sphi 0, %s211
      %s228 = sphi 0, %s212
    $region4: #{tpu_custom_call.1} parent=1 // loop_header_branch
      %19 = sbr.rel (%p17) target = $region8
    $region5: #{tpu_custom_call.1} parent=1 // loop_body
      %s21 = ssub.s32 %s16, 1
      %s22 = ssub.s32 %s16, 2
      %s32 = sadd.s32 1, %s25
      %p33 = scmp.ge.s32.totalorder %s32, 1
      %s34 = scalar_select %p33, 0, %s32
      %s35 = sadd.s32 1, %s24
      %s36 = scalar_select %p33, %s35, %s24
      %p37 = scmp.ge.s32.totalorder %s36, 1
      %s38 = scalar_select %p37, 0, %s36
      %s39 = sadd.s32 1, %s23
      %s40 = scalar_select %p37, %s39, %s23
      %p41 = scmp.ge.s32.totalorder %s40, 2
      %s42 = scalar_select %p41, 0, %s40
      %s43 = ssub.s32 %s23, %s42
      %s44 = ssub.s32 %s24, %s38
      %s45 = sor.u32 %s43, %s44
      %p46 = scmp.eq.s32.totalorder %s45, 0
      %s48 = sadd.s32 %s47, 1
      %s49 = scalar_select %p46, %s47, %s48
      %p52 = pneg %p46
      %p53 = scmp.eq.s32.totalorder %s16, 1
      %p54 = por %p52, %p53
      %p55 = scmp.ne.s32.totalorder %s47, %s50
      %p56 = scmp.eq.s32.totalorder %s16, 0
      %p57 = por %p55, %p56
      %p58 = scmp.ne.s32.totalorder %s47, %s50
      %p59 = scmp.eq.s32.totalorder %s21, 1
      %p60 = por %p58, %p59
      %p61 = scmp.ne.s32.totalorder %s50, %s51
      %p62 = scmp.eq.s32.totalorder %s21, 0
      %p63 = por %p61, %p62
      %p64 = scmp.ne.s32.totalorder %s50, %s51
      %p65 = scmp.eq.s32.totalorder %s22, 1
      %p66 = por %p64, %p65
      %p68 = scmp.ne.s32.totalorder %s51, %s67
      %p69 = scmp.eq.s32.totalorder %s22, 0
      %p70 = por %p68, %p69
      %s71 = ssub.s32 %s23, %s42
      %s72 = ssub.s32 %s25, %s34
      %s73 = sor.u32 %s71, %s72
      %p74 = scmp.eq.s32.totalorder %s73, 0
      %s76 = sadd.s32 %s75, 1
      %s77 = scalar_select %p74, %s75, %s76
      %p80 = pneg %p74
      %p81 = scmp.eq.s32.totalorder %s16, 1
      %p82 = por %p80, %p81
      %p83 = scmp.ne.s32.totalorder %s75, %s78
      %p84 = scmp.eq.s32.totalorder %s16, 0
      %p85 = por %p83, %p84
      %p86 = scmp.ne.s32.totalorder %s75, %s78
      %p87 = scmp.eq.s32.totalorder %s21, 1
      %p88 = por %p86, %p87
      %p89 = scmp.ne.s32.totalorder %s78, %s79
      %p90 = scmp.eq.s32.totalorder %s21, 0
      %p91 = por %p89, %p90
      %p92 = scmp.ne.s32.totalorder %s78, %s79
      %p93 = scmp.eq.s32.totalorder %s22, 1
      %p94 = por %p92, %p93
      %p96 = scmp.ne.s32.totalorder %s79, %s95
      %p97 = scmp.eq.s32.totalorder %s22, 0
      %p98 = por %p96, %p97
      %s100 = sadd.s32 %s99, 1
      %p103 = scmp.eq.s32.totalorder %s16, 1
      %p104 = scmp.ne.s32.totalorder %s99, %s101
      %p105 = scmp.eq.s32.totalorder %s16, 0
      %p106 = por %p104, %p105
      %p107 = scmp.ne.s32.totalorder %s99, %s101
      %p108 = scmp.eq.s32.totalorder %s21, 1
      %p109 = por %p107, %p108
      %p110 = scmp.ne.s32.totalorder %s101, %s102
      %p111 = scmp.eq.s32.totalorder %s21, 0
      %p112 = por %p110, %p111
      %p113 = scmp.ne.s32.totalorder %s101, %s102
      %p114 = scmp.eq.s32.totalorder %s22, 1
      %p115 = por %p113, %p114
      %p117 = scmp.ne.s32.totalorder %s102, %s116
      %p118 = scmp.eq.s32.totalorder %s22, 0
      %p119 = por %p117, %p118
      %s121 = sadd.s32 %s120, 1
      %p124 = scmp.eq.s32.totalorder %s16, 1
      %p125 = scmp.ne.s32.totalorder %s120, %s122
      %p126 = scmp.eq.s32.totalorder %s16, 0
      %p127 = por %p125, %p126
      %p128 = scmp.ne.s32.totalorder %s120, %s122
      %p129 = scmp.eq.s32.totalorder %s21, 1
      %p130 = por %p128, %p129
      %p131 = scmp.ne.s32.totalorder %s122, %s123
      %p132 = scmp.eq.s32.totalorder %s21, 0
      %p133 = por %p131, %p132
      %p134 = scmp.ne.s32.totalorder %s122, %s123
      %p135 = scmp.eq.s32.totalorder %s22, 1
      %p136 = por %p134, %p135
      %p138 = scmp.ne.s32.totalorder %s123, %s137
      %p139 = scmp.eq.s32.totalorder %s22, 0
      %p140 = por %p138, %p139
      %s142 = sadd.s32 %s141, 1
      %p145 = scmp.eq.s32.totalorder %s16, 1
      %p146 = scmp.ne.s32.totalorder %s141, %s143
      %p147 = scmp.eq.s32.totalorder %s16, 0
      %p148 = por %p146, %p147
      %p149 = scmp.ne.s32.totalorder %s141, %s143
      %p150 = scmp.eq.s32.totalorder %s21, 1
      %p151 = por %p149, %p150
      %p152 = scmp.ne.s32.totalorder %s143, %s144
      %p153 = scmp.eq.s32.totalorder %s21, 0
      %p154 = por %p152, %p153
      %p155 = scmp.ne.s32.totalorder %s143, %s144
      %p156 = scmp.eq.s32.totalorder %s22, 1
      %p157 = por %p155, %p156
      %p159 = scmp.ne.s32.totalorder %s144, %s158
      %p160 = scmp.eq.s32.totalorder %s22, 0
      %p161 = por %p159, %p160
      %s163 = sadd.s32 %s162, 1
      %p166 = scmp.eq.s32.totalorder %s16, 1
      %p167 = scmp.ne.s32.totalorder %s162, %s164
      %p168 = scmp.eq.s32.totalorder %s16, 0
      %p169 = por %p167, %p168
      %p170 = scmp.ne.s32.totalorder %s162, %s164
      %p171 = scmp.eq.s32.totalorder %s21, 1
      %p172 = por %p170, %p171
      %p173 = scmp.ne.s32.totalorder %s164, %s165
      %p174 = scmp.eq.s32.totalorder %s21, 0
      %p175 = por %p173, %p174
      %p176 = scmp.ne.s32.totalorder %s164, %s165
      %p177 = scmp.eq.s32.totalorder %s22, 1
      %p178 = por %p176, %p177
      %p180 = scmp.ne.s32.totalorder %s165, %s179
      %p181 = scmp.eq.s32.totalorder %s22, 0
      %p182 = por %p180, %p181
      %s184 = sadd.s32 %s183, 1
      %p187 = scmp.eq.s32.totalorder %s16, 1
      %p188 = scmp.ne.s32.totalorder %s183, %s185
      %p189 = scmp.eq.s32.totalorder %s16, 0
      %p190 = por %p188, %p189
      %p191 = scmp.ne.s32.totalorder %s183, %s185
      %p192 = scmp.eq.s32.totalorder %s21, 1
      %p193 = por %p191, %p192
      %p194 = scmp.ne.s32.totalorder %s185, %s186
      %p195 = scmp.eq.s32.totalorder %s21, 0
      %p196 = por %p194, %p195
      %p197 = scmp.ne.s32.totalorder %s185, %s186
      %p198 = scmp.eq.s32.totalorder %s22, 1
      %p199 = por %p197, %p198
      %p201 = scmp.ne.s32.totalorder %s186, %s200
      %p202 = scmp.eq.s32.totalorder %s22, 0
      %p203 = por %p201, %p202
      %s204 = ssub.s32 %s23, %s42
      %s205 = ssub.s32 %s24, %s38
      %s206 = sor.u32 %s204, %s205
      %p207 = scmp.eq.s32.totalorder %s206, 0
      %s209 = sadd.s32 %s208, 1
      %s210 = scalar_select %p207, %s208, %s209
      %p213 = pneg %p207
      %p214 = scmp.eq.s32.totalorder %s16, 1
      %p215 = por %p213, %p214
      %p216 = scmp.ne.s32.totalorder %s208, %s211
      %p217 = scmp.eq.s32.totalorder %s16, 0
      %p218 = por %p216, %p217
      %p219 = scmp.ne.s32.totalorder %s208, %s211
      %p220 = scmp.eq.s32.totalorder %s21, 1
      %p221 = por %p219, %p220
      %p222 = scmp.ne.s32.totalorder %s211, %s212
      %p223 = scmp.eq.s32.totalorder %s21, 0
      %p224 = por %p222, %p223
      %p225 = scmp.ne.s32.totalorder %s211, %s212
      %p226 = scmp.eq.s32.totalorder %s22, 1
      %p227 = por %p225, %p226
      %p229 = scmp.ne.s32.totalorder %s212, %s228
      %p230 = scmp.eq.s32.totalorder %s22, 0
      %p231 = por %p229, %p230
      %p232 = scmp.le.s32.totalorder 1, %s16
      %p233 = scmp.lt.s32.totalorder %s16, 3
      %p234 = pnand %p232, %p233
      %p235 = pneg %p234
      // Predicated region
      $region9: #{tpu_custom_call.1} parent=5 // pred_check
        _
      $region10: #{tpu_custom_call.1} parent=5 // pred_check_branch
        %237 = sbr.rel (%p234) target = $region12
      $region11: #{tpu_custom_call.1} parent=5 // pred_region
        %s238 = ssub.s32 %s16, 1
        // Predicated region
        $region13: #{tpu_custom_call.1} parent=11 // pred_check
          %p239 = pneg %p112
        $region14: #{tpu_custom_call.1} parent=11 // pred_check_branch
          %241 = sbr.rel (%p239) target = $region16
        $region15: #{tpu_custom_call.1} parent=11 // pred_region
          _
        $region16: #{tpu_custom_call.1} parent=11 // pred_fallthru
          _
        // Predicated region
        $region17: #{tpu_custom_call.1} parent=11 // pred_check
          %p242 = pneg %p133
        $region18: #{tpu_custom_call.1} parent=11 // pred_check_branch
          %244 = sbr.rel (%p242) target = $region20
        $region19: #{tpu_custom_call.1} parent=11 // pred_region
          _
        $region20: #{tpu_custom_call.1} parent=11 // pred_fallthru
          _
        // Predicated region
        $region21: #{tpu_custom_call.1} parent=11 // pred_check
          %p245 = pneg %p154
        $region22: #{tpu_custom_call.1} parent=11 // pred_check_branch
          %247 = sbr.rel (%p245) target = $region24
        $region23: #{tpu_custom_call.1} parent=11 // pred_region
          _
        $region24: #{tpu_custom_call.1} parent=11 // pred_fallthru
          _
        // Predicated region
        $region25: #{tpu_custom_call.1} parent=11 // pred_check
          %p248 = pneg %p175
        $region26: #{tpu_custom_call.1} parent=11 // pred_check_branch
          %250 = sbr.rel (%p248) target = $region28
        $region27: #{tpu_custom_call.1} parent=11 // pred_region
          _
        $region28: #{tpu_custom_call.1} parent=11 // pred_fallthru
          _
        // Predicated region
        $region29: #{tpu_custom_call.1} parent=11 // pred_check
          %p251 = pneg %p196
        $region30: #{tpu_custom_call.1} parent=11 // pred_check_branch
          %253 = sbr.rel (%p251) target = $region32
        $region31: #{tpu_custom_call.1} parent=11 // pred_region
          _
        $region32: #{tpu_custom_call.1} parent=11 // pred_fallthru
          _
      $region12: #{tpu_custom_call.1} parent=5 // pred_fallthru
        _
      %p254 = scmp.lt.s32.totalorder %s16, 2
      // Predicated region
      $region33: #{tpu_custom_call.1} parent=5 // pred_check
        %p255 = pneg %p254
      $region34: #{tpu_custom_call.1} parent=5 // pred_check_branch
        %257 = sbr.rel (%p255) target = $region36
      $region35: #{tpu_custom_call.1} parent=5 // pred_region
        // Predicated region
        $region37: #{tpu_custom_call.1} parent=35 // pred_check
          %p258 = pneg %p57
        $region38: #{tpu_custom_call.1} parent=35 // pred_check_branch
          %260 = sbr.rel (%p258) target = $region40
        $region39: #{tpu_custom_call.1} parent=35 // pred_region
          %s261 = smul.u32 2, %s24
          %p262 = scmp.lt.s32.totalorder %s23, 1
          %s263 = scalar_select %p262, %s23, 1
          %p264 = scmp.lt.s32.totalorder %s261, 1
          %s265 = scalar_select %p264, %s261, 1
          %s266 = smul.addr %s263, 2
          %s267 = sadd.s32 %s265, %s266
          %s268 = smul.addr %s267, 4
          %s269 = scalar_lea.vmem %s0, %s268
          %s270 = smul.u32 2, %s24
        $region40: #{tpu_custom_call.1} parent=35 // pred_fallthru
          _
        // Predicated region
        $region41: #{tpu_custom_call.1} parent=35 // pred_check
          %p271 = pneg %p85
        $region42: #{tpu_custom_call.1} parent=35 // pred_check_branch
          %273 = sbr.rel (%p271) target = $region44
        $region43: #{tpu_custom_call.1} parent=35 // pred_region
          %s274 = smul.u32 2, %s25
          %p275 = scmp.lt.s32.totalorder %s23, 1
          %s276 = scalar_select %p275, %s23, 1
          %p277 = scmp.lt.s32.totalorder %s274, 1
          %s278 = scalar_select %p277, %s274, 1
          %s279 = smul.addr %s276, 2
          %s280 = sadd.s32 %s278, %s279
          %s281 = smul.addr %s280, 4
          %s282 = scalar_lea.vmem %s1, %s281
          %s283 = smul.u32 2, %s25
        $region44: #{tpu_custom_call.1} parent=35 // pred_fallthru
          _
      $region36: #{tpu_custom_call.1} parent=5 // pred_fallthru
        _
      %p284 = scmp.le.s32.totalorder 1, %s16
      %p285 = scmp.lt.s32.totalorder %s16, 3
      %p286 = pnand %p284, %p285
      %p287 = pneg %p286
      // Predicated region
      $region45: #{tpu_custom_call.1} parent=5 // pred_check
        _
      $region46: #{tpu_custom_call.1} parent=5 // pred_check_branch
        %289 = sbr.rel (%p286) target = $region48
      $region47: #{tpu_custom_call.1} parent=5 // pred_region
        %s290 = ssub.s32 %s16, 1
        %s291 = smul.u32 2, %s27
        %p292 = scmp.lt.s32.totalorder %s26, 1
        %s293 = scalar_select %p292, %s26, 1
        %p294 = scmp.lt.s32.totalorder %s291, 1
        %s295 = scalar_select %p294, %s291, 1
        %s296 = smul.addr %s293, 2
        %s297 = sadd.s32 %s295, %s296
        %s298 = smul.addr %s297, 4
        %s299 = scalar_lea.vmem %s0, %s298
        %p300 = pneg %p63
        %p301 = pneg %p60
        %s302 = smul.u32 2, %s28
        %p303 = scmp.lt.s32.totalorder %s26, 1
        %s304 = scalar_select %p303, %s26, 1
        %p305 = scmp.lt.s32.totalorder %s302, 1
        %s306 = scalar_select %p305, %s302, 1
        %s307 = smul.addr %s304, 2
        %s308 = sadd.s32 %s306, %s307
        %s309 = smul.addr %s308, 4
        %s310 = scalar_lea.vmem %s1, %s309
        %p311 = pneg %p91
        %p312 = pneg %p88
        %p313 = pneg %p112
        %p314 = pneg %p109
        %p315 = pneg %p133
        %p316 = pneg %p130
        %p317 = pneg %p154
        %p318 = pneg %p151
        %p319 = pneg %p175
        %p320 = pneg %p172
        %p321 = pneg %p196
        %p322 = pneg %p193
        %p323 = pneg %p224
        %p324 = pneg %p221
        %s325 = sand.u32 %s211, 1
        %s326 = scalar_lea.sflag [#allocation7], %s325
        %s327 = sand.u32 %s211, 1
        %s328 = smul.addr %s327, 8
        %s329 = scalar_lea.vmem [#allocation6], %s328
        %s330 = smul.u32 2, %s27
        %p331 = scmp.lt.s32.totalorder %s26, 1
        %s332 = scalar_select %p331, %s26, 1
        %p333 = scmp.lt.s32.totalorder %s330, 1
        %s334 = scalar_select %p333, %s330, 1
        %s335 = smul.addr %s332, 2
        %s336 = sadd.s32 %s334, %s335
        %s337 = smul.addr %s336, 4
        %s338 = scalar_lea.vmem %s0, %s337
        %s339 = smul.u32 2, %s27
        %s340 = smul.u32 2, %s28
        %p341 = scmp.lt.s32.totalorder %s26, 1
        %s342 = scalar_select %p341, %s26, 1
        %p343 = scmp.lt.s32.totalorder %s340, 1
        %s344 = scalar_select %p343, %s340, 1
        %s345 = smul.addr %s342, 2
        %s346 = sadd.s32 %s344, %s345
        %s347 = smul.addr %s346, 4
        %s348 = scalar_lea.vmem %s1, %s347
        %s349 = smul.u32 2, %s28
        %p351 = scmp.eq.s32.totalorder %s28, 0
        // Predicated region
        $region49: #{tpu_custom_call.1} parent=47 // pred_check
          %p352 = pneg %p351
        $region50: #{tpu_custom_call.1} parent=47 // pred_check_branch
          %354 = sbr.rel (%p352) target = $region52
        $region51: #{tpu_custom_call.1} parent=47 // pred_region
          %v355 = vld [vmem:[%s338] sm:$0xf]
          %v356 = vld [vmem:[%s338 + $0x4] sm:$0xf]
          %v357 = vld [vmem:[%s2] sm:$0xf]
          %v360 = vunpack.c.l.b16 %v355
          %v361 = vunpack.c.l.b16 %v356
          %v362 = vpack.c.b16 %v361, %v360
          %vm363 = vcmask 64512
          %v365 = vsel %vm363, %v362, 0
          %vm367 = vcmask 1043456
          %v369 = vsel %vm367, %v357, 0
          %371 = vmatprep.subr.bf16.mxu0 0
          %372 = vmatpush1.bf16.msra.mxu0 %v369
          %373 = vmatprep.subr.bf16.mxu0 0
          %374 = vmatpush1.bf16.msra.mxu0 0
          %375 = vmatprep.subr.bf16.mxu0 0
          %376 = vmatpush1.bf16.msra.mxu0 0
          %377 = vmatprep.subr.bf16.mxu0 0
          %378 = vmatpush1.bf16.msra.mxu0 0
          %379 = vmatprep.subr.bf16.mxu0 0
          %380 = vmatpush1.bf16.msra.mxu0 0
          %381 = vmatprep.subr.bf16.mxu0 0
          %382 = vmatpush1.bf16.msra.mxu0 0
          %383 = vmatprep.subr.bf16.mxu0 0
          %384 = vmatpush1.bf16.msra.mxu0 0
          %385 = vmatprep.subr.bf16.mxu0 0
          %386 = vmatpush1.bf16.msra.mxu0 0
          %387 = vmatprep.subr.bf16.mxu0 0
          %388 = vmatpush1.bf16.msra.mxu0 0
          %389 = vmatprep.subr.bf16.mxu0 0
          %390 = vmatpush1.bf16.msra.mxu0 0
          %391 = vmatprep.subr.bf16.mxu0 0
          %392 = vmatpush1.bf16.msra.mxu0 0
          %393 = vmatprep.subr.bf16.mxu0 0
          %394 = vmatpush1.bf16.msra.mxu0 0
          %395 = vmatprep.subr.bf16.mxu0 0
          %396 = vmatpush1.bf16.msra.mxu0 0
          %397 = vmatprep.subr.bf16.mxu0 0
          %398 = vmatpush1.bf16.msra.mxu0 0
          %399 = vmatprep.subr.bf16.mxu0 0
          %400 = vmatpush1.bf16.msra.mxu0 0
          %401 = vmatprep.subr.bf16.mxu0 0
          %402 = vmatpush1.bf16.msra.mxu0 0
          %403 = vmatprep.mubr.bf16.mxu0 0
          %404 = vmatmul.mubr.bf16.gmra.mrb[0].mxu0 %v365
          %v405 = vpop.f32.mrb[0].mxu0
          %v406 = vadd.f32 0.0, %v405
          %v407 = vpop.f32.mrb[0].mxu0
          %v408 = vpop.f32.mrb[0].mxu0
          %v409 = vadd.f32 0.0, %v408
          %v410 = vpop.f32.mrb[0].mxu0
          %411 = vdwg.mxu0
          %v412 = vpack.c.bf16 %v409, %v406
          %vm413 = vcmask 261120
          %414 = vst.msk [vmem:[#allocation2] sm:$0xff] %vm413, %v412
          %vm415 = vcmask 7168
          %416 = vst.msk [vmem:[#allocation4] sm:$0xff] %vm415, -inf
          %417 = vst.msk [vmem:[#allocation4 + $0x8] sm:$0xff] %vm415, -inf
          %418 = vst.msk [vmem:[#allocation4 + $0x10] sm:$0xff] %vm415, -inf
          %419 = vst.msk [vmem:[#allocation4 + $0x18] sm:$0xff] %vm415, -inf
          %420 = vst.msk [vmem:[#allocation5] sm:$0xff] %vm415, 0.0
          %421 = vst.msk [vmem:[#allocation5 + $0x8] sm:$0xff] %vm415, 0.0
          %422 = vst.msk [vmem:[#allocation5 + $0x10] sm:$0xff] %vm415, 0.0
          %423 = vst.msk [vmem:[#allocation5 + $0x18] sm:$0xff] %vm415, 0.0
          %424 = vst.msk [vmem:[#allocation3] sm:$0xff] %vm413, 0.0
          %425 = vst.msk [vmem:[#allocation3 + $0x8] sm:$0xff] %vm413, 0.0
        $region52: #{tpu_custom_call.1} parent=47 // pred_fallthru
          _
        %v426 = vld [vmem:[%s348] sm:$0xf]
        %v427 = vld [vmem:[%s348 + $0x4] sm:$0xf]
        %v428 = vld [vmem:[%s3] sm:$0xf]
        %v431 = vunpack.c.l.b16 %v426
        %v432 = vunpack.c.l.b16 %v427
        %v433 = vpack.c.b16 %v432, %v431
        %vm434 = vcmask 64512
        %v436 = vsel %vm434, %v433, 0
        %vm438 = vcmask 1043456
        %v440 = vsel %vm438, %v428, 0
        %442 = vmatprep.subr.bf16.mxu0 0
        %443 = vmatpush1.bf16.msra.mxu0 %v440
        %444 = vmatprep.subr.bf16.mxu0 0
        %445 = vmatpush1.bf16.msra.mxu0 0
        %446 = vmatprep.subr.bf16.mxu0 0
        %447 = vmatpush1.bf16.msra.mxu0 0
        %448 = vmatprep.subr.bf16.mxu0 0
        %449 = vmatpush1.bf16.msra.mxu0 0
        %450 = vmatprep.subr.bf16.mxu0 0
        %451 = vmatpush1.bf16.msra.mxu0 0
        %452 = vmatprep.subr.bf16.mxu0 0
        %453 = vmatpush1.bf16.msra.mxu0 0
        %454 = vmatprep.subr.bf16.mxu0 0
        %455 = vmatpush1.bf16.msra.mxu0 0
        %456 = vmatprep.subr.bf16.mxu0 0
        %457 = vmatpush1.bf16.msra.mxu0 0
        %458 = vmatprep.subr.bf16.mxu0 0
        %459 = vmatpush1.bf16.msra.mxu0 0
        %460 = vmatprep.subr.bf16.mxu0 0
        %461 = vmatpush1.bf16.msra.mxu0 0
        %462 = vmatprep.subr.bf16.mxu0 0
        %463 = vmatpush1.bf16.msra.mxu0 0
        %464 = vmatprep.subr.bf16.mxu0 0
        %465 = vmatpush1.bf16.msra.mxu0 0
        %466 = vmatprep.subr.bf16.mxu0 0
        %467 = vmatpush1.bf16.msra.mxu0 0
        %468 = vmatprep.subr.bf16.mxu0 0
        %469 = vmatpush1.bf16.msra.mxu0 0
        %470 = vmatprep.subr.bf16.mxu0 0
        %471 = vmatpush1.bf16.msra.mxu0 0
        %472 = vmatprep.subr.bf16.mxu0 0
        %473 = vmatpush1.bf16.msra.mxu0 0
        %474 = vmatprep.mubr.bf16.mxu0 0
        %475 = vmatmul.mubr.bf16.gmra.mrb[0].mxu0 %v436
        %v476 = vpop.f32.mrb[0].mxu0
        %v477 = vadd.f32 0.0, %v476
        %v478 = vpop.f32.mrb[0].mxu0
        %v479 = vpop.f32.mrb[0].mxu0
        %v480 = vadd.f32 0.0, %v479
        %v481 = vpop.f32.mrb[0].mxu0
        %482 = vdwg.mxu0
        %v483 = vpack.c.bf16 %v480, %v477
        %v484 = vld [vmem:[%s4] sm:$0xf]
        %v486 = vsel %vm438, %v484, 0
        %488 = vmatprep.subr.bf16.mxu0 0
        %489 = vmatpush1.bf16.msra.mxu0 %v486
        %490 = vmatprep.subr.bf16.mxu0 0
        %491 = vmatpush1.bf16.msra.mxu0 0
        %492 = vmatprep.subr.bf16.mxu0 0
        %493 = vmatpush1.bf16.msra.mxu0 0
        %494 = vmatprep.subr.bf16.mxu0 0
        %495 = vmatpush1.bf16.msra.mxu0 0
        %496 = vmatprep.subr.bf16.mxu0 0
        %497 = vmatpush1.bf16.msra.mxu0 0
        %498 = vmatprep.subr.bf16.mxu0 0
        %499 = vmatpush1.bf16.msra.mxu0 0
        %500 = vmatprep.subr.bf16.mxu0 0
        %501 = vmatpush1.bf16.msra.mxu0 0
        %502 = vmatprep.subr.bf16.mxu0 0
        %503 = vmatpush1.bf16.msra.mxu0 0
        %504 = vmatprep.subr.bf16.mxu0 0
        %505 = vmatpush1.bf16.msra.mxu0 0
        %506 = vmatprep.subr.bf16.mxu0 0
        %507 = vmatpush1.bf16.msra.mxu0 0
        %508 = vmatprep.subr.bf16.mxu0 0
        %509 = vmatpush1.bf16.msra.mxu0 0
        %510 = vmatprep.subr.bf16.mxu0 0
        %511 = vmatpush1.bf16.msra.mxu0 0
        %512 = vmatprep.subr.bf16.mxu0 0
        %513 = vmatpush1.bf16.msra.mxu0 0
        %514 = vmatprep.subr.bf16.mxu0 0
        %515 = vmatpush1.bf16.msra.mxu0 0
        %516 = vmatprep.subr.bf16.mxu0 0
        %517 = vmatpush1.bf16.msra.mxu0 0
        %518 = vmatprep.subr.bf16.mxu0 0
        %519 = vmatpush1.bf16.msra.mxu0 0
        %520 = vmatprep.mubr.bf16.mxu0 0
        %521 = vmatmul.mubr.bf16.gmra.mrb[0].mxu0 %v436
        %v522 = vpop.f32.mrb[0].mxu0
        %v523 = vadd.f32 0.0, %v522
        %v524 = vpop.f32.mrb[0].mxu0
        %v525 = vpop.f32.mrb[0].mxu0
        %v526 = vadd.f32 0.0, %v525
        %v527 = vpop.f32.mrb[0].mxu0
        %528 = vdwg.mxu0
        %v529 = vpack.c.bf16 %v526, %v523
        %v530 = vld [vmem:[#allocation2] sm:$0xff]
        %vm531 = vcmask 130048
        %v533 = vsel %vm531, %v530, 0
        %v536 = vsel %vm531, %v483, 0
        %538 = vmatprep.subr.bf16.mxu0 0
        %539 = vmatpush1.bf16.xpose.msra.mxu0 %v536
        %540 = vmatprep.subr.bf16.mxu0 0
        %541 = vmatpush1.bf16.xpose.msra.mxu0 0
        %542 = vmatprep.subr.bf16.mxu0 0
        %543 = vmatpush1.bf16.xpose.msra.mxu0 0
        %544 = vmatprep.subr.bf16.mxu0 0
        %545 = vmatpush1.bf16.xpose.msra.mxu0 0
        %546 = vmatprep.subr.bf16.mxu0 0
        %547 = vmatpush1.bf16.xpose.msra.mxu0 0
        %548 = vmatprep.subr.bf16.mxu0 0
        %549 = vmatpush1.bf16.xpose.msra.mxu0 0
        %550 = vmatprep.subr.bf16.mxu0 0
        %551 = vmatpush1.bf16.xpose.msra.mxu0 0
        %552 = vmatprep.subr.bf16.mxu0 0
        %553 = vmatpush1.bf16.xpose.msra.mxu0 0
        %554 = vmatprep.subr.bf16.mxu0 0
        %555 = vmatpush1.bf16.xpose.msra.mxu0 0
        %556 = vmatprep.subr.bf16.mxu0 0
        %557 = vmatpush1.bf16.xpose.msra.mxu0 0
        %558 = vmatprep.subr.bf16.mxu0 0
        %559 = vmatpush1.bf16.xpose.msra.mxu0 0
        %560 = vmatprep.subr.bf16.mxu0 0
        %561 = vmatpush1.bf16.xpose.msra.mxu0 0
        %562 = vmatprep.subr.bf16.mxu0 0
        %563 = vmatpush1.bf16.xpose.msra.mxu0 0
        %564 = vmatprep.subr.bf16.mxu0 0
        %565 = vmatpush1.bf16.xpose.msra.mxu0 0
        %566 = vmatprep.subr.bf16.mxu0 0
        %567 = vmatpush1.bf16.xpose.msra.mxu0 0
        %568 = vmatprep.subr.bf16.mxu0 0
        %569 = vmatpush1.bf16.xpose.msra.mxu0 0
        %570 = vmatprep.mubr.bf16.mxu0 0
        %571 = vmatmul.mubr.bf16.gmra.mrb[0].mxu0 %v533
        %v572 = vpop.f32.mrb[0].mxu0
        %v573 = vadd.f32 0.0, %v572
        %v574 = vpop.f32.mrb[0].mxu0
        %v575 = vpop.f32.mrb[0].mxu0
        %v576 = vadd.f32 0.0, %v575
        %v577 = vpop.f32.mrb[0].mxu0
        %578 = vdwg.mxu0
        %v579 = vld [vmem:[#allocation4] sm:$0xff]
        %v580 = vld [vmem:[#allocation4 + $0x8] sm:$0xff]
        %v581 = vsel %vm531, %v573, -inf
        %582 = vmax.xlane.f32.xlu0 %v581
        %v583 = vpop.xlane.xlu0 %582
        %v584 = vsel %vm531, %v576, -inf
        %585 = vmax.xlane.f32.xlu0 %v584
        %v586 = vpop.xlane.xlu0 %585
        %v587 = vmax.f32 %v579, %v583
        %v588 = vmax.f32 %v580, %v586
        %v589 = vsub.f32 %v579, %v587
        %v590 = vsub.f32 %v580, %v588
        %v591 = vmul.f32 %v589, 1.442695
        %v592 = vpow.pop %v591
        %v593 = vmul.f32 %v590, 1.442695
        %v594 = vpow.pop %v593
        %596 = vset.pattern.permute.xlu0 0
        %597 = vperm.xlu0 %596, %v587
        %v598 = vpop.permute.xlu0 %597
        %601 = vset.pattern.permute.xlu0 0
        %602 = vperm.xlu0 %601, %v588
        %v603 = vpop.permute.xlu0 %602
        %v605 = vsub.f32 %v573, %v598
        %v606 = vsub.f32 %v576, %v603
        %v607 = vmul.f32 %v605, 1.442695
        %v608 = vpow.pop %v607
        %v609 = vmul.f32 %v606, 1.442695
        %v610 = vpow.pop %v609
        %v611 = vld [vmem:[#allocation5] sm:$0xff]
        %v612 = vld [vmem:[#allocation5 + $0x8] sm:$0xff]
        %v613 = vmul.f32 %v592, %v611
        %v614 = vmul.f32 %v594, %v612
        %v615 = vsel %vm531, %v608, 0.0
        %616 = vadd.xlane.f32.xlu0 %v615
        %v617 = vpop.xlane.xlu0 %616
        %v618 = vsel %vm531, %v610, 0.0
        %619 = vadd.xlane.f32.xlu0 %v618
        %v620 = vpop.xlane.xlu0 %619
        %v621 = vadd.f32 %v613, %v617
        %v622 = vadd.f32 %v614, %v620
        %vm623 = vcmask 7168
        %624 = vst.msk [vmem:[#allocation5] sm:$0xff] %vm623, %v621
        %625 = vst.msk [vmem:[#allocation5 + $0x8] sm:$0xff] %vm623, %v622
        %v626 = vpack.c.bf16 %v610, %v608
        %v628 = vsel %vm531, %v626, 0
        %630 = vmatprep.subr.bf16.mxu0 0
        %631 = vmatpush1.bf16.msra.mxu0 %v529
        %632 = vmatprep.subr.bf16.mxu0 0
        %633 = vmatpush1.bf16.msra.mxu0 0
        %634 = vmatprep.subr.bf16.mxu0 0
        %635 = vmatpush1.bf16.msra.mxu0 0
        %636 = vmatprep.subr.bf16.mxu0 0
        %637 = vmatpush1.bf16.msra.mxu0 0
        %638 = vmatprep.subr.bf16.mxu0 0
        %639 = vmatpush1.bf16.msra.mxu0 0
        %640 = vmatprep.subr.bf16.mxu0 0
        %641 = vmatpush1.bf16.msra.mxu0 0
        %642 = vmatprep.subr.bf16.mxu0 0
        %643 = vmatpush1.bf16.msra.mxu0 0
        %644 = vmatprep.subr.bf16.mxu0 0
        %645 = vmatpush1.bf16.msra.mxu0 0
        %646 = vmatprep.subr.bf16.mxu0 0
        %647 = vmatpush1.bf16.msra.mxu0 0
        %648 = vmatprep.subr.bf16.mxu0 0
        %649 = vmatpush1.bf16.msra.mxu0 0
        %650 = vmatprep.subr.bf16.mxu0 0
        %651 = vmatpush1.bf16.msra.mxu0 0
        %652 = vmatprep.subr.bf16.mxu0 0
        %653 = vmatpush1.bf16.msra.mxu0 0
        %654 = vmatprep.subr.bf16.mxu0 0
        %655 = vmatpush1.bf16.msra.mxu0 0
        %656 = vmatprep.subr.bf16.mxu0 0
        %657 = vmatpush1.bf16.msra.mxu0 0
        %658 = vmatprep.subr.bf16.mxu0 0
        %659 = vmatpush1.bf16.msra.mxu0 0
        %660 = vmatprep.subr.bf16.mxu0 0
        %661 = vmatpush1.bf16.msra.mxu0 0
        %662 = vmatprep.mubr.bf16.mxu0 0
        %663 = vmatmul.mubr.bf16.gmra.mrb[0].mxu0 %v628
        %v664 = vpop.f32.mrb[0].mxu0
        %v665 = vadd.f32 0.0, %v664
        %v666 = vpop.f32.mrb[0].mxu0
        %v667 = vpop.f32.mrb[0].mxu0
        %v668 = vadd.f32 0.0, %v667
        %v669 = vpop.f32.mrb[0].mxu0
        %670 = vdwg.mxu0
        %v671 = vld [vmem:[#allocation3] sm:$0xff]
        %v672 = vld [vmem:[#allocation3 + $0x8] sm:$0xff]
        %674 = vset.pattern.permute.xlu0 0
        %675 = vperm.xlu0 %674, %v592
        %v676 = vpop.permute.xlu0 %675
        %679 = vset.pattern.permute.xlu0 0
        %680 = vperm.xlu0 %679, %v594
        %v681 = vpop.permute.xlu0 %680
        %v683 = vmul.f32 %v676, %v671
        %v684 = vmul.f32 %v681, %v672
        %v685 = vadd.f32 %v683, %v665
        %v686 = vadd.f32 %v684, %v668
        %687 = vst.msk [vmem:[#allocation3] sm:$0xff] %vm531, %v685
        %688 = vst.msk [vmem:[#allocation3 + $0x8] sm:$0xff] %vm531, %v686
        %689 = vst.msk [vmem:[#allocation4] sm:$0xff] %vm623, %v587
        %690 = vst.msk [vmem:[#allocation4 + $0x8] sm:$0xff] %vm623, %v588
        %v691 = vld [vmem:[#allocation2] sm:$0xff]
        %693 = vrot.lane.b32.xlu0 %v691, 112
        %v694 = vpop.permute.xlu0 %693
        %696 = vrot.lane.b32.xlu0 %v483, 112
        %v697 = vpop.permute.xlu0 %696
        %v699 = vsel %vm531, %v694, 0
        %v702 = vsel %vm531, %v697, 0
        %704 = vmatprep.subr.bf16.mxu0 0
        %705 = vmatpush1.bf16.xpose.msra.mxu0 %v702
        %706 = vmatprep.subr.bf16.mxu0 0
        %707 = vmatpush1.bf16.xpose.msra.mxu0 0
        %708 = vmatprep.subr.bf16.mxu0 0
        %709 = vmatpush1.bf16.xpose.msra.mxu0 0
        %710 = vmatprep.subr.bf16.mxu0 0
        %711 = vmatpush1.bf16.xpose.msra.mxu0 0
        %712 = vmatprep.subr.bf16.mxu0 0
        %713 = vmatpush1.bf16.xpose.msra.mxu0 0
        %714 = vmatprep.subr.bf16.mxu0 0
        %715 = vmatpush1.bf16.xpose.msra.mxu0 0
        %716 = vmatprep.subr.bf16.mxu0 0
        %717 = vmatpush1.bf16.xpose.msra.mxu0 0
        %718 = vmatprep.subr.bf16.mxu0 0
        %719 = vmatpush1.bf16.xpose.msra.mxu0 0
        %720 = vmatprep.subr.bf16.mxu0 0
        %721 = vmatpush1.bf16.xpose.msra.mxu0 0
        %722 = vmatprep.subr.bf16.mxu0 0
        %723 = vmatpush1.bf16.xpose.msra.mxu0 0
        %724 = vmatprep.subr.bf16.mxu0 0
        %725 = vmatpush1.bf16.xpose.msra.mxu0 0
        %726 = vmatprep.subr.bf16.mxu0 0
        %727 = vmatpush1.bf16.xpose.msra.mxu0 0
        %728 = vmatprep.subr.bf16.mxu0 0
        %729 = vmatpush1.bf16.xpose.msra.mxu0 0
        %730 = vmatprep.subr.bf16.mxu0 0
        %731 = vmatpush1.bf16.xpose.msra.mxu0 0
        %732 = vmatprep.subr.bf16.mxu0 0
        %733 = vmatpush1.bf16.xpose.msra.mxu0 0
        %734 = vmatprep.subr.bf16.mxu0 0
        %735 = vmatpush1.bf16.xpose.msra.mxu0 0
        %736 = vmatprep.mubr.bf16.mxu0 0
        %737 = vmatmul.mubr.bf16.gmra.mrb[0].mxu0 %v699
        %v738 = vpop.f32.mrb[0].mxu0
        %v739 = vadd.f32 0.0, %v738
        %v740 = vpop.f32.mrb[0].mxu0
        %v741 = vpop.f32.mrb[0].mxu0
        %v742 = vadd.f32 0.0, %v741
        %v743 = vpop.f32.mrb[0].mxu0
        %744 = vdwg.mxu0
        %s745 = scalar_lea.vmem [#allocation4], 16
        %v746 = vld [vmem:[%s745] sm:$0xff]
        %v747 = vld [vmem:[%s745 + $0x8] sm:$0xff]
        %v748 = vsel %vm531, %v739, -inf
        %749 = vmax.xlane.f32.xlu0 %v748
        %v750 = vpop.xlane.xlu0 %749
        %v751 = vsel %vm531, %v742, -inf
        %752 = vmax.xlane.f32.xlu0 %v751
        %v753 = vpop.xlane.xlu0 %752
        %v754 = vmax.f32 %v746, %v750
        %v755 = vmax.f32 %v747, %v753
        %v756 = vsub.f32 %v746, %v754
        %v757 = vsub.f32 %v747, %v755
        %v758 = vmul.f32 %v756, 1.442695
        %v759 = vpow.pop %v758
        %v760 = vmul.f32 %v757, 1.442695
        %v761 = vpow.pop %v760
        %763 = vset.pattern.permute.xlu0 0
        %764 = vperm.xlu0 %763, %v754
        %v765 = vpop.permute.xlu0 %764
        %768 = vset.pattern.permute.xlu0 0
        %769 = vperm.xlu0 %768, %v755
        %v770 = vpop.permute.xlu0 %769
        %v772 = vsub.f32 %v739, %v765
        %v773 = vsub.f32 %v742, %v770
        %v774 = vmul.f32 %v772, 1.442695
        %v775 = vpow.pop %v774
        %v776 = vmul.f32 %v773, 1.442695
        %v777 = vpow.pop %v776
        %s778 = scalar_lea.vmem [#allocation5], 16
        %v779 = vld [vmem:[%s778] sm:$0xff]
        %v780 = vld [vmem:[%s778 + $0x8] sm:$0xff]
        %v781 = vmul.f32 %v759, %v779
        %v782 = vmul.f32 %v761, %v780
        %v783 = vsel %vm531, %v775, 0.0
        %784 = vadd.xlane.f32.xlu0 %v783
        %v785 = vpop.xlane.xlu0 %784
        %v786 = vsel %vm531, %v777, 0.0
        %787 = vadd.xlane.f32.xlu0 %v786
        %v788 = vpop.xlane.xlu0 %787
        %v789 = vadd.f32 %v781, %v785
        %v790 = vadd.f32 %v782, %v788
        %791 = vst.msk [vmem:[%s778] sm:$0xff] %vm623, %v789
        %792 = vst.msk [vmem:[%s778 + $0x8] sm:$0xff] %vm623, %v790
        %v793 = vpack.c.bf16 %v777, %v775
        %795 = vrot.lane.b32.xlu0 %v529, 112
        %v796 = vpop.permute.xlu0 %795
        %v799 = vsel %vm531, %v793, 0
        %801 = vmatprep.subr.bf16.mxu0 0
        %802 = vmatpush1.bf16.msra.mxu0 %v796
        %803 = vmatprep.subr.bf16.mxu0 0
        %804 = vmatpush1.bf16.msra.mxu0 0
        %805 = vmatprep.subr.bf16.mxu0 0
        %806 = vmatpush1.bf16.msra.mxu0 0
        %807 = vmatprep.subr.bf16.mxu0 0
        %808 = vmatpush1.bf16.msra.mxu0 0
        %809 = vmatprep.subr.bf16.mxu0 0
        %810 = vmatpush1.bf16.msra.mxu0 0
        %811 = vmatprep.subr.bf16.mxu0 0
        %812 = vmatpush1.bf16.msra.mxu0 0
        %813 = vmatprep.subr.bf16.mxu0 0
        %814 = vmatpush1.bf16.msra.mxu0 0
        %815 = vmatprep.subr.bf16.mxu0 0
        %816 = vmatpush1.bf16.msra.mxu0 0
        %817 = vmatprep.subr.bf16.mxu0 0
        %818 = vmatpush1.bf16.msra.mxu0 0
        %819 = vmatprep.subr.bf16.mxu0 0
        %820 = vmatpush1.bf16.msra.mxu0 0
        %821 = vmatprep.subr.bf16.mxu0 0
        %822 = vmatpush1.bf16.msra.mxu0 0
        %823 = vmatprep.subr.bf16.mxu0 0
        %824 = vmatpush1.bf16.msra.mxu0 0
        %825 = vmatprep.subr.bf16.mxu0 0
        %826 = vmatpush1.bf16.msra.mxu0 0
        %827 = vmatprep.subr.bf16.mxu0 0
        %828 = vmatpush1.bf16.msra.mxu0 0
        %829 = vmatprep.subr.bf16.mxu0 0
        %830 = vmatpush1.bf16.msra.mxu0 0
        %831 = vmatprep.subr.bf16.mxu0 0
        %832 = vmatpush1.bf16.msra.mxu0 0
        %833 = vmatprep.mubr.bf16.mxu0 0
        %834 = vmatmul.mubr.bf16.gmra.mrb[0].mxu0 %v799
        %v835 = vpop.f32.mrb[0].mxu0
        %v836 = vadd.f32 0.0, %v835
        %v837 = vpop.f32.mrb[0].mxu0
        %v838 = vpop.f32.mrb[0].mxu0
        %v839 = vadd.f32 0.0, %v838
        %v840 = vpop.f32.mrb[0].mxu0
        %841 = vdwg.mxu0
        %v842 = vld [vmem:[#allocation3] sm:$0xff]
        %v843 = vld [vmem:[#allocation3 + $0x8] sm:$0xff]
        %845 = vset.pattern.permute.xlu0 0
        %846 = vperm.xlu0 %845, %v759
        %v847 = vpop.permute.xlu0 %846
        %850 = vset.pattern.permute.xlu0 0
        %851 = vperm.xlu0 %850, %v761
        %v852 = vpop.permute.xlu0 %851
        %v854 = vmul.f32 %v847, %v842
        %v855 = vmul.f32 %v852, %v843
        %858 = vrot.lane.b32.xlu0 %v836, 16
        %v859 = vpop.permute.xlu0 %858
        %860 = vrot.lane.b32.xlu0 %v839, 16
        %v861 = vpop.permute.xlu0 %860
        %v864 = vadd.f32 %v854, %v859
        %v865 = vadd.f32 %v855, %v861
        %vm866 = vcmask 261248
        %867 = vst.msk [vmem:[#allocation3] sm:$0xff] %vm866, %v864
        %868 = vst.msk [vmem:[#allocation3 + $0x8] sm:$0xff] %vm866, %v865
        %869 = vst.msk [vmem:[%s745] sm:$0xff] %vm623, %v754
        %870 = vst.msk [vmem:[%s745 + $0x8] sm:$0xff] %vm623, %v755
        // Predicated region
        $region53: #{tpu_custom_call.1} parent=47 // pred_check
          %p871 = pneg %p351
        $region54: #{tpu_custom_call.1} parent=47 // pred_check_branch
          %873 = sbr.rel (%p871) target = $region56
        $region55: #{tpu_custom_call.1} parent=47 // pred_region
          %v874 = vld [vmem:[#allocation5] sm:$0xff]
          %v875 = vld [vmem:[#allocation5 + $0x8] sm:$0xff]
          %v876 = vrcp.pop %v874
          %v877 = vrcp.pop %v875
          %v878 = vld [vmem:[#allocation3] sm:$0xff]
          %v879 = vld [vmem:[#allocation3 + $0x8] sm:$0xff]
          %881 = vset.pattern.permute.xlu0 0
          %882 = vperm.xlu0 %881, %v876
          %v883 = vpop.permute.xlu0 %882
          %886 = vset.pattern.permute.xlu0 0
          %887 = vperm.xlu0 %886, %v877
          %v888 = vpop.permute.xlu0 %887
          %v890 = vmul.f32 %v878, %v883
          %v891 = vmul.f32 %v879, %v888
          %892 = vst.msk [vmem:[#allocation3] sm:$0xff] %vm531, %v890
          %893 = vst.msk [vmem:[#allocation3 + $0x8] sm:$0xff] %vm531, %v891
          %v894 = vld [vmem:[%s778] sm:$0xff]
          %v895 = vld [vmem:[%s778 + $0x8] sm:$0xff]
          %v896 = vrcp.pop %v894
          %v897 = vrcp.pop %v895
          %v898 = vld [vmem:[#allocation3] sm:$0xff]
          %v899 = vld [vmem:[#allocation3 + $0x8] sm:$0xff]
          %901 = vset.pattern.permute.xlu0 0
          %902 = vperm.xlu0 %901, %v896
          %v903 = vpop.permute.xlu0 %902
          %906 = vset.pattern.permute.xlu0 0
          %907 = vperm.xlu0 %906, %v897
          %v908 = vpop.permute.xlu0 %907
          %v910 = vmul.f32 %v898, %v903
          %v911 = vmul.f32 %v899, %v908
          %912 = vst.msk [vmem:[#allocation3] sm:$0xff] %vm866, %v910
          %913 = vst.msk [vmem:[#allocation3 + $0x8] sm:$0xff] %vm866, %v911
          %v914 = vld [vmem:[#allocation3] sm:$0xff]
          %v915 = vld [vmem:[#allocation3 + $0x8] sm:$0xff]
          %v916 = vpack.c.bf16 %v915, %v914
          %v917 = vld [vmem:[%s5] sm:$0xf]
          %v918 = vld [vmem:[%s6] sm:$0xff]
          %920 = vset.pattern.permute.xlu0 0
          %921 = vperm.xlu0 %920, %v918
          %v922 = vpop.permute.xlu0 %921
          %vm924 = vcmask 261120
          %v926 = vsel %vm924, %v917, 0
          %v929 = vsel %vm924, %v916, 0
          %931 = vmatprep.subr.bf16.mxu0 0
          %932 = vmatpush1.bf16.xpose.msra.mxu0 %v929
          %933 = vmatprep.subr.bf16.mxu0 0
          %934 = vmatpush1.bf16.xpose.msra.mxu0 0
          %935 = vmatprep.subr.bf16.mxu0 0
          %936 = vmatpush1.bf16.xpose.msra.mxu0 0
          %937 = vmatprep.subr.bf16.mxu0 0
          %938 = vmatpush1.bf16.xpose.msra.mxu0 0
          %939 = vmatprep.subr.bf16.mxu0 0
          %940 = vmatpush1.bf16.xpose.msra.mxu0 0
          %941 = vmatprep.subr.bf16.mxu0 0
          %942 = vmatpush1.bf16.xpose.msra.mxu0 0
          %943 = vmatprep.subr.bf16.mxu0 0
          %944 = vmatpush1.bf16.xpose.msra.mxu0 0
          %945 = vmatprep.subr.bf16.mxu0 0
          %946 = vmatpush1.bf16.xpose.msra.mxu0 0
          %947 = vmatprep.subr.bf16.mxu0 0
          %948 = vmatpush1.bf16.xpose.msra.mxu0 0
          %949 = vmatprep.subr.bf16.mxu0 0
          %950 = vmatpush1.bf16.xpose.msra.mxu0 0
          %951 = vmatprep.subr.bf16.mxu0 0
          %952 = vmatpush1.bf16.xpose.msra.mxu0 0
          %953 = vmatprep.subr.bf16.mxu0 0
          %954 = vmatpush1.bf16.xpose.msra.mxu0 0
          %955 = vmatprep.subr.bf16.mxu0 0
          %956 = vmatpush1.bf16.xpose.msra.mxu0 0
          %957 = vmatprep.subr.bf16.mxu0 0
          %958 = vmatpush1.bf16.xpose.msra.mxu0 0
          %959 = vmatprep.subr.bf16.mxu0 0
          %960 = vmatpush1.bf16.xpose.msra.mxu0 0
          %961 = vmatprep.subr.bf16.mxu0 0
          %962 = vmatpush1.bf16.xpose.msra.mxu0 0
          %963 = vmatprep.mubr.bf16.mxu0 0
          %964 = vmatmul.mubr.bf16.gmra.mrb[0].mxu0 %v926
          %v965 = vpop.f32.mrb[0].mxu0
          %v966 = vadd.f32 %v922, %v965
          %v967 = vpop.f32.mrb[0].mxu0
          %v968 = vpop.f32.mrb[0].mxu0
          %v969 = vpop.f32.mrb[0].mxu0
          %970 = vdwg.mxu0
          %v971 = vxor.u32 %v966, 2147483648
          %v972 = vmul.f32 %v971, 1.442695
          %v973 = vpow.pop %v972
          %v974 = vadd.f32 %v973, 1.0
          %v975 = vrcp.pop %v974
          %v976 = vmul.f32 1.0, %v975
          %v977 = vmul.f32 %v966, %v976
          %978 = vst.msk [vmem:[%s329] sm:$0xff] %vm531, %v977
        $region56: #{tpu_custom_call.1} parent=47 // pred_fallthru
          _
        %s979 = sand.u32 %s211, 1
        %s980 = scalar_lea.sflag [#allocation7], %s979
        %s981 = sand.u32 %s211, 1
        %s982 = smul.addr %s981, 8
        %s983 = scalar_lea.vmem [#allocation6], %s982
        // Predicated region
        $region57: #{tpu_custom_call.1} parent=47 // pred_check
          %p984 = pneg %p221
        $region58: #{tpu_custom_call.1} parent=47 // pred_check_branch
          %986 = sbr.rel (%p984) target = $region60
        $region59: #{tpu_custom_call.1} parent=47 // pred_region
          %s988 = ssub.s32 128, 128
          %989 = vsyncadd %s980, %s988
          %s990 = sadd.s32 %s27, %s26
          %s991 = smul.addr %s990, 128
          %s992 = scalar_lea.hbm %s7, %s991
          %s994 = sshll.u32 %s983, 4
          %s995 = int_to_ptr.vmem [resolvable:$true] %s994
          %997 = dma.vmem_to_hbm [thread:$0]  %s995, 128, %s992, %s980
        $region60: #{tpu_custom_call.1} parent=47 // pred_fallthru
          _
      $region48: #{tpu_custom_call.1} parent=5 // pred_fallthru
        _
      %p998 = scmp.le.s32.totalorder 2, %s16
      // Predicated region
      $region61: #{tpu_custom_call.1} parent=5 // pred_check
        %p999 = pneg %p998
      $region62: #{tpu_custom_call.1} parent=5 // pred_check_branch
        %1001 = sbr.rel (%p999) target = $region64
      $region63: #{tpu_custom_call.1} parent=5 // pred_region
        %s1002 = ssub.s32 %s16, 2
        // Predicated region
        $region65: #{tpu_custom_call.1} parent=63 // pred_check
          %p1003 = pneg %p227
        $region66: #{tpu_custom_call.1} parent=63 // pred_check_branch
          %1005 = sbr.rel (%p1003) target = $region68
        $region67: #{tpu_custom_call.1} parent=63 // pred_region
          %s1006 = sand.u32 %s212, 1
          %s1007 = scalar_lea.sflag [#allocation7], %s1006
          %s1008 = sand.u32 %s212, 1
          %s1009 = smul.addr %s1008, 8
          %s1010 = scalar_lea.vmem [#allocation6], %s1009
          %1011 = dma.done %s1007, 128
        $region68: #{tpu_custom_call.1} parent=63 // pred_fallthru
          _
      $region64: #{tpu_custom_call.1} parent=5 // pred_fallthru
        _
    $region6: #{tpu_custom_call.1} parent=1 // loop_footer
      %s20 = sadd.s32 1, %s16
    $region7: #{tpu_custom_call.1} parent=1 // loop_footer_branch
      %15 = sbr.rel target = $region3
    $region8: #{tpu_custom_call.1} parent=1 // loop_exit
      _
    %1012 = vsyncpa [#allocation7], 1
    %s1013 = scalar_lea.sflag [#allocation7], 1
    %1014 = vsyncpa %s1013, 1

</llo_original>
